<compile_context>
chip_gen: v7x
topology: tpu7x:2x2x1
jax: 0.10.0
libtpu: 0.0.40
codegen_flags: <defaults>
</compile_context>

<pallas_src>
import functools

import jax
import jax.numpy as jnp
from jax.experimental import pallas as pl
from jax.experimental.pallas import tpu as pltpu


# --------------------------------------------------------------------------
# Per-chip tile targets
# --------------------------------------------------------------------------

def _chip_targets():
    """Tile targets + VMEM limit per TPU generation."""
    try:
        kind = jax.devices()[0].device_kind.lower()
    except Exception:
        kind = ""
    if "v5" in kind:
        # v5e: 4x128^2 MXU, single vector-store slot -> 128/256-matched tiles.
        return dict(tm=256, tn=256, tk=256, ti=256, tq=256, ts=512,
                    vmem=100 * 1024 * 1024)
    if "v7" in kind or "tpu7" in kind:
        # v7x: only 64 MiB physical VMEM per TC -> smaller N/I tiles.
        return dict(tm=256, tn=256, tk=512, ti=256, tq=256, ts=512,
                    vmem=48 * 1024 * 1024)
    # v6e default: 2x256^2 MXU, 128 MiB VMEM -> big tiles, generous limit.
    return dict(tm=256, tn=512, tk=512, ti=512, tq=256, ts=1024,
                vmem=100 * 1024 * 1024)


_TGT = _chip_targets()
TM_TARGET = _TGT["tm"]
TN_TARGET = _TGT["tn"]
TK_TARGET = _TGT["tk"]
TI_TARGET = _TGT["ti"]
TQ_TARGET = _TGT["tq"]
TS_TARGET = _TGT["ts"]
VMEM_LIMIT = _TGT["vmem"]


def _pick_tile(dim, target, align):
    """Largest tile <= target that divides `dim` and respects `align`;
    falls back to the full dimension (always a legal block shape)."""
    if dim <= target:
        return dim
    t = (target // align) * align
    while t >= align:
        if dim % t == 0:
            return t
        t -= align
    # TODO(synk): pad ragged dims to the next aligned multiple instead of
    # falling back to the full dimension (which can over-size the block).
    return dim


# --------------------------------------------------------------------------
# Pallas kernels
# --------------------------------------------------------------------------

def _layernorm(x, g, b):
    mu = jnp.mean(x, axis=-1, keepdims=True)
    var = jnp.mean(jnp.square(x - mu), axis=-1, keepdims=True)
    return (x - mu) * jax.lax.rsqrt(var + 1e-5) * g + b


def _ln_dense_bias_kernel(x_ref, g_ref, beta_ref, w_ref, bias_ref, o_ref,
                          xln_ref):
    # LayerNorm computed once per M tile (j == 0) and cached in VMEM scratch.
    @pl.when(pl.program_id(1) == 0)
    def _():
        xln_ref[...] = _layernorm(x_ref[...], g_ref[...],
                                  beta_ref[...]).astype(xln_ref.dtype)
    y = jnp.dot(xln_ref[...], w_ref[...], preferred_element_type=jnp.float32)
    o_ref[...] = (y + bias_ref[...]).astype(o_ref.dtype)


def _ln_dense_kernel(x_ref, g_ref, beta_ref, w_ref, o_ref, xln_ref):
    @pl.when(pl.program_id(1) == 0)
    def _():
        xln_ref[...] = _layernorm(x_ref[...], g_ref[...],
                                  beta_ref[...]).astype(xln_ref.dtype)
    o_ref[...] = jnp.dot(xln_ref[...], w_ref[...],
                         preferred_element_type=jnp.float32
                         ).astype(o_ref.dtype)


def ln_dense(x, g, beta, w, bias=None, out_dtype=jnp.float32):
    """y = LayerNorm(x) @ w (+ bias).  Grid over (M, N); K kept whole for LN.
    LN result cached in a per-M-tile VMEM scratch, so the N sweep reuses it."""
    lead = x.shape[:-1]
    H = x.shape[-1]
    N = w.shape[-1]
    x2 = x.reshape(-1, H)
    M = x2.shape[0]
    tm = _pick_tile(M, TM_TARGET, 16)
    tn = _pick_tile(N, TN_TARGET, 128)
    in_specs = [
        pl.BlockSpec((tm, H), lambda i, j: (i, 0)),
        pl.BlockSpec((1, H), lambda i, j: (0, 0)),
        pl.BlockSpec((1, H), lambda i, j: (0, 0)),
        pl.BlockSpec((H, tn), lambda i, j: (0, j)),
    ]
    args = [x2, g.reshape(1, H), beta.reshape(1, H), w]
    if bias is not None:
        in_specs.append(pl.BlockSpec((1, tn), lambda i, j: (0, j)))
        args.append(bias.reshape(1, N))
        kernel = _ln_dense_bias_kernel
    else:
        kernel = _ln_dense_kernel
    out = pl.pallas_call(
        kernel,
        out_shape=jax.ShapeDtypeStruct((M, N), out_dtype),
        grid=(M // tm, N // tn),
        in_specs=in_specs,
        out_specs=pl.BlockSpec((tm, tn), lambda i, j: (i, j)),
        scratch_shapes=[pltpu.VMEM((tm, H), w.dtype)],
        compiler_params=pltpu.CompilerParams(
            dimension_semantics=("parallel", "arbitrary"),
            vmem_limit_bytes=VMEM_LIMIT),
    )(*args)
    return out.reshape(*lead, N)


def _dense_kernel(x_ref, w_ref, b_ref, o_ref):
    acc = jnp.dot(x_ref[...].astype(w_ref.dtype), w_ref[...],
                  preferred_element_type=jnp.float32)

    @pl.when(pl.program_id(2) == 0)
    def _():
        o_ref[...] = acc + b_ref[...]

    @pl.when(pl.program_id(2) != 0)
    def _():
        o_ref[...] += acc


def _dense_res_kernel(x_ref, w_ref, b_ref, r_ref, o_ref):
    acc = jnp.dot(x_ref[...].astype(w_ref.dtype), w_ref[...],
                  preferred_element_type=jnp.float32)

    @pl.when(pl.program_id(2) == 0)
    def _():
        o_ref[...] = acc + b_ref[...] + r_ref[...]

    @pl.when(pl.program_id(2) != 0)
    def _():
        o_ref[...] += acc


def dense(x, w, b, residual=None):
    """y = x @ w + b (+ residual), (M,N,K)-tiled.  Accumulates directly into
    the resident f32 output block (no scratch); x tile is cast in-kernel."""
    lead = x.shape[:-1]
    K = x.shape[-1]
    N = w.shape[-1]
    x2 = x.reshape(-1, K)
    M = x2.shape[0]
    tm = _pick_tile(M, TM_TARGET, 16)
    tn = _pick_tile(N, TN_TARGET, 128)
    tk = _pick_tile(K, TK_TARGET, 128)
    in_specs = [
        pl.BlockSpec((tm, tk), lambda i, j, k: (i, k)),
        pl.BlockSpec((tk, tn), lambda i, j, k: (k, j)),
        pl.BlockSpec((1, tn), lambda i, j, k: (0, j)),
    ]
    args = [x2, w, b.reshape(1, N)]
    if residual is not None:
        in_specs.append(pl.BlockSpec((tm, tn), lambda i, j, k: (i, j)))
        args.append(residual.reshape(-1, N))
        kernel = _dense_res_kernel
    else:
        kernel = _dense_kernel
    out = pl.pallas_call(
        kernel,
        out_shape=jax.ShapeDtypeStruct((M, N), jnp.float32),
        grid=(M // tm, N // tn, K // tk),
        in_specs=in_specs,
        out_specs=pl.BlockSpec((tm, tn), lambda i, j, k: (i, j)),
        compiler_params=pltpu.CompilerParams(
            dimension_semantics=("parallel", "parallel", "arbitrary"),
            vmem_limit_bytes=VMEM_LIMIT),
    )(*args)
    return out.reshape(*lead, N)


def _flash_attn_kernel(q_ref, k_ref, v_ref, o_ref, m_ref, l_ref, acc_ref):
    """Online-softmax attention over S tiles.  q is pre-scaled (1/sqrt(D)
    folded into the qkv weights).  No causal mask (matches the torch spec)."""
    si = pl.program_id(2)

    @pl.when(si == 0)
    def _():
        m_ref[...] = jnp.full_like(m_ref, -jnp.inf)
        l_ref[...] = jnp.zeros_like(l_ref)
        acc_ref[...] = jnp.zeros_like(acc_ref)

    q = q_ref[0]                       # (tq, D) bf16, all q-heads of this group
    k = k_ref[0]                       # (ts, D) bf16
    v = v_ref[0]                       # (ts, D) bf16
    # q @ k^T, contracting on head_dim (no transpose materialized).
    s = jax.lax.dot_general(q, k, (((1,), (1,)), ((), ())),
                            preferred_element_type=jnp.float32)   # (tq, ts)
    m_prev = m_ref[...]
    m_new = jnp.maximum(m_prev, jnp.max(s, axis=-1, keepdims=True))
    alpha = jnp.exp(m_prev - m_new)
    p = jnp.exp(s - m_new)
    l_ref[...] = alpha * l_ref[...] + jnp.sum(p, axis=-1, keepdims=True)
    acc_ref[...] = alpha * acc_ref[...] + jnp.dot(
        p.astype(v.dtype), v, preferred_element_type=jnp.float32)
    m_ref[...] = m_new

    @pl.when(si == pl.num_programs(2) - 1)
    def _():
        o_ref[0] = (acc_ref[...] * pl.reciprocal(l_ref[...], approx=True)
                    ).astype(o_ref.dtype)


def attention(q, k, v):
    """softmax(q k^T) v (scale folded into q), no causal mask.  GQA via the
    grid index (query head h uses KV head h // group) — no repeat_kv.  S is
    tiled with an online-softmax reduction; output is written in bf16."""
    B, nh, Tq, hd = q.shape
    nkv, S = k.shape[1], k.shape[2]
    group = nh // nkv
    G = B * nkv
    Mq = group * Tq
    qg = q.reshape(B, nkv, group, Tq, hd).reshape(G, Mq, hd)
    kg = k.reshape(G, S, hd)
    vg = v.reshape(G, S, hd)
    tq = _pick_tile(Mq, TQ_TARGET, 16)
    ts = _pick_tile(S, TS_TARGET, 16)
    out = pl.pallas_call(
        _flash_attn_kernel,
        out_shape=jax.ShapeDtypeStruct((G, Mq, hd), q.dtype),
        grid=(G, Mq // tq, S // ts),
        in_specs=[
            pl.BlockSpec((1, tq, hd), lambda g, i, j: (g, i, 0)),
            pl.BlockSpec((1, ts, hd), lambda g, i, j: (g, j, 0)),
            pl.BlockSpec((1, ts, hd), lambda g, i, j: (g, j, 0)),
        ],
        out_specs=pl.BlockSpec((1, tq, hd), lambda g, i, j: (g, i, 0)),
        scratch_shapes=[pltpu.VMEM((tq, 1), jnp.float32),
                        pltpu.VMEM((tq, 1), jnp.float32),
                        pltpu.VMEM((tq, hd), jnp.float32)],
        compiler_params=pltpu.CompilerParams(
            dimension_semantics=("parallel", "parallel", "arbitrary"),
            vmem_limit_bytes=VMEM_LIMIT),
    )(qg, kg, vg)
    return out.reshape(B, nkv, group, Tq, hd).reshape(B, nh, Tq, hd)


def _ln_mlp_kernel(x_ref, g_ref, beta_ref, gw_ref, gb_ref, uw_ref, ub_ref,
                   dw_ref, db_ref, o_ref, xln_ref):
    j = pl.program_id(1)

    @pl.when(j == 0)
    def _():
        xln_ref[...] = _layernorm(x_ref[...], g_ref[...],
                                  beta_ref[...]).astype(xln_ref.dtype)

    xn = xln_ref[...]
    g = jnp.dot(xn, gw_ref[...], preferred_element_type=jnp.float32) + gb_ref[...]
    u = jnp.dot(xn, uw_ref[...], preferred_element_type=jnp.float32) + ub_ref[...]
    h = (g * jax.nn.sigmoid(g) * u).astype(dw_ref.dtype)       # exact SiLU
    part = jnp.dot(h, dw_ref[...], preferred_element_type=jnp.float32)

    @pl.when(j == 0)
    def _():
        o_ref[...] = x_ref[...] + db_ref[...] + part            # fused residual

    @pl.when(j != 0)
    def _():
        o_ref[...] += part


def mlp_ln(x, p):
    """Fused ln2 + SwiGLU MLP + residual: x + down(silu(gate(ln(x)))*up(ln(x))).
    Grid over (M, I), I is the down-projection reduction axis; LN cached in
    VMEM scratch and the reduction accumulates into the resident output."""
    lead = x.shape[:-1]
    H = x.shape[-1]
    I = p["gate_w"].shape[-1]
    x2 = x.reshape(-1, H)
    M = x2.shape[0]
    tm = _pick_tile(M, TM_TARGET, 16)
    ti = _pick_tile(I, TI_TARGET, 128)
    out = pl.pallas_call(
        _ln_mlp_kernel,
        out_shape=jax.ShapeDtypeStruct((M, H), jnp.float32),
        grid=(M // tm, I // ti),
        in_specs=[
            pl.BlockSpec((tm, H), lambda i, j: (i, 0)),
            pl.BlockSpec((1, H), lambda i, j: (0, 0)),
            pl.BlockSpec((1, H), lambda i, j: (0, 0)),
            pl.BlockSpec((H, ti), lambda i, j: (0, j)),
            pl.BlockSpec((1, ti), lambda i, j: (0, j)),
            pl.BlockSpec((H, ti), lambda i, j: (0, j)),
            pl.BlockSpec((1, ti), lambda i, j: (0, j)),
            pl.BlockSpec((ti, H), lambda i, j: (j, 0)),
            pl.BlockSpec((1, H), lambda i, j: (0, 0)),
        ],
        out_specs=pl.BlockSpec((tm, H), lambda i, j: (i, 0)),
        scratch_shapes=[pltpu.VMEM((tm, H), jnp.bfloat16)],
        compiler_params=pltpu.CompilerParams(
            dimension_semantics=("parallel", "arbitrary"),
            vmem_limit_bytes=VMEM_LIMIT),
    )(x2, p["ln2_g"].reshape(1, H), p["ln2_b"].reshape(1, H),
      p["gate_w"], p["gate_b"].reshape(1, I),
      p["up_w"], p["up_b"].reshape(1, I),
      p["down_w"], p["down_b"].reshape(1, H))
    return out.reshape(*lead, H)


# --------------------------------------------------------------------------
# Model glue (plain JAX): rotary, layer composition
# --------------------------------------------------------------------------

def rotate_half(x):
    x1, x2 = jnp.split(x, 2, axis=-1)
    return jnp.concatenate([-x2, x1], axis=-1)


def apply_rotary_pos_emb(q, k, rope):
    # rope: (2, 1, T, head_dim); rope[0]=cos, rope[1]=sin.
    # Cast cos/sin to the q/k dtype so the bf16 fast path stays bf16.
    cos = rope[0][None].astype(q.dtype)   # (1, 1, T, hd)
    sin = rope[1][None].astype(q.dtype)
    q = q * cos + rotate_half(q) * sin
    k = k * cos + rotate_half(k) * sin
    return q, k


def layer_head(p, hidden, rope, cfg):
    B, T, H = hidden.shape
    residual = hidden
    # ln1 fused into the (q|k|v)-fused projection kernel; output in bf16 so
    # the rope / head-split / attention / KV-cache path streams bf16.
    qkv = ln_dense(hidden, p["ln1_g"], p["ln1_b"], p["qkv_w"], p["qkv_b"],
                   out_dtype=jnp.bfloat16)
    hd = cfg["head_dim"]
    nh, nkv = cfg["num_heads"], cfg["num_kv_heads"]
    kv_size = hd * nkv
    q, k, v = jnp.split(qkv, [H, H + kv_size], axis=-1)
    # TODO(synk): fuse the head-split transposes + rotary (pltpu.roll) into the
    # projection kernel to avoid these intermediate bf16 HBM copies.
    q = q.reshape(B, T, nh, hd).transpose(0, 2, 1, 3)
    k = k.reshape(B, T, nkv, hd).transpose(0, 2, 1, 3)
    v = v.reshape(B, T, nkv, hd).transpose(0, 2, 1, 3)
    q, k = apply_rotary_pos_emb(q, k, rope)
    return residual, q, k, v


def layer_bottom(p, residual, q, ks, vs, cfg):
    attn_out = attention(q, ks, vs)                            # bf16 (B,nh,Tq,hd)
    B, nh, Tq, hd = attn_out.shape
    attn_out = attn_out.transpose(0, 2, 1, 3).reshape(B, Tq, nh * hd)
    # out_proj with the residual add fused into the kernel epilogue.
    hidden = dense(attn_out, p["out_w"], p["out_b"], residual=residual)
    # ln2 + SwiGLU MLP + second residual add fused into one kernel.
    return mlp_ln(hidden, p)


def head_fwd(p, input_ids, rope, cfg):
    hidden = jnp.take(p["embedding"], input_ids, axis=0)       # (B, T, H) f32
    return layer_head(p["layer_head"], hidden, rope, cfg)


def segment_fwd(p, residual, rope, q, ks, vs, cfg):
    hidden = layer_bottom(p["layer_bottom"], residual, q, ks, vs, cfg)
    return layer_head(p["layer_head"], hidden, rope, cfg)


def tail_fwd(p, residual, q, ks, vs, cfg):
    hidden = layer_bottom(p["layer_bottom"], residual, q, ks, vs, cfg)
    # final_ln fused into the (bias-less) lm_head matmul; logits stay f32.
    return ln_dense(hidden, p["final_ln_g"], p["final_ln_b"], p["lm_head_w"])


def segmented_klm_forward(params, input_ids, rope, past_ks, past_vs, cfg):
    # KV cache streamed / stored in bf16 (halves decode-attention HBM traffic);
    # the returned cache is bf16 as well and can be fed straight back in.
    past_ks = past_ks.astype(jnp.bfloat16)
    past_vs = past_vs.astype(jnp.bfloat16)
    residual, q, k, v = head_fwd(params["head"], input_ids, rope, cfg)
    new_past_k, new_past_v = [], []
    num_segments = len(params["segments"])
    # TODO(synk): a preallocated in-place KV cache (dynamic_update_slice or
    # input_output_aliases) would avoid re-copying the past cache, but would
    # change the module's growing-cache output signature, so concat is kept.
    for i in range(num_segments):
        ks = jnp.concatenate([past_ks[i], k], axis=2)
        vs = jnp.concatenate([past_vs[i], v], axis=2)
        new_past_k.append(ks)
        new_past_v.append(vs)
        residual, q, k, v = segment_fwd(params["segments"][i], residual, rope,
                                        q, ks, vs, cfg)
    ks = jnp.concatenate([past_ks[num_segments], k], axis=2)
    vs = jnp.concatenate([past_vs[num_segments], v], axis=2)
    new_past_k.append(ks)
    new_past_v.append(vs)
    logits = tail_fwd(params["tail"], residual, q, ks, vs, cfg)
    # TODO(synk): trace_tensor / executing() are profiling no-ops; omitted.
    return logits, jnp.stack(new_past_k, axis=0), jnp.stack(new_past_v, axis=0)


# --------------------------------------------------------------------------
# Deterministic parameter init (torch-like layout) + one-time prep
# --------------------------------------------------------------------------

def _linear(key, fan_in, fan_out):
    return (0.02 * jax.random.normal(key, (fan_in, fan_out), jnp.float32),
            jnp.zeros((fan_out,), jnp.float32))


def init_layer_head(key, cfg):
    H = cfg["hidden_size"]
    kv = cfg["head_dim"] * cfg["num_kv_heads"]
    k1, k2, k3 = jax.random.split(key, 3)
    qw, qb = _linear(k1, H, H)
    kw, kb = _linear(k2, H, kv)
    vw, vb = _linear(k3, H, kv)
    return dict(ln1_g=jnp.ones((H,), jnp.float32),
                ln1_b=jnp.zeros((H,), jnp.float32),
                q_w=qw, q_b=qb, k_w=kw, k_b=kb, v_w=vw, v_b=vb)


def init_layer_bottom(key, cfg):
    H, I = cfg["hidden_size"], cfg["intermediate_size"]
    k1, k2, k3, k4 = jax.random.split(key, 4)
    ow, ob = _linear(k1, H, H)
    gw, gb = _linear(k2, H, I)
    uw, ub = _linear(k3, H, I)
    dw, db = _linear(k4, I, H)
    return dict(out_w=ow, out_b=ob,
                gate_w=gw, gate_b=gb, up_w=uw, up_b=ub, down_w=dw, down_b=db,
                ln2_g=jnp.ones((H,), jnp.float32),
                ln2_b=jnp.zeros((H,), jnp.float32))


def init_params(key, cfg):
    H, V = cfg["hidden_size"], cfg["vocab_size"]
    keys = jax.random.split(key, 4 + 2 * cfg["num_layers"])
    head = dict(embedding=0.02 * jax.random.normal(keys[0], (V, H), jnp.float32),
                layer_head=init_layer_head(keys[1], cfg))
    segments = []
    for i in range(cfg["num_layers"] - 1):
        segments.append(dict(layer_bottom=init_layer_bottom(keys[2 + 2 * i], cfg),
                             layer_head=init_layer_head(keys[3 + 2 * i], cfg)))
    tail = dict(layer_bottom=init_layer_bottom(keys[-2], cfg),
                final_ln_g=jnp.ones((H,), jnp.float32),
                final_ln_b=jnp.zeros((H,), jnp.float32),
                lm_head_w=0.02 * jax.random.normal(keys[-1], (H, V), jnp.float32))
    return dict(head=head, segments=segments, tail=tail)


def prepare_params(params, cfg):
    """One-time: fuse q|k|v projections, fold 1/sqrt(head_dim) into the q
    columns, and cast matmul weights to bf16 (biases / LayerNorm params stay
    f32; accumulation stays f32)."""
    scale = 1.0 / (cfg["head_dim"] ** 0.5)

    def prep_head(lh):
        qkv_w = jnp.concatenate([lh["q_w"] * scale, lh["k_w"], lh["v_w"]],
                                axis=1)
        qkv_b = jnp.concatenate([lh["q_b"] * scale, lh["k_b"], lh["v_b"]],
                                axis=0)
        return dict(ln1_g=lh["ln1_g"], ln1_b=lh["ln1_b"],
                    qkv_w=qkv_w.astype(jnp.bfloat16), qkv_b=qkv_b)

    def prep_bottom(lb):
        out = dict(lb)
        for name in ("out_w", "gate_w", "up_w", "down_w"):
            out[name] = lb[name].astype(jnp.bfloat16)
        return out

    head = dict(embedding=params["head"]["embedding"],
                layer_head=prep_head(params["head"]["layer_head"]))
    segments = [dict(layer_bottom=prep_bottom(s["layer_bottom"]),
                     layer_head=prep_head(s["layer_head"]))
                for s in params["segments"]]
    tail = dict(layer_bottom=prep_bottom(params["tail"]["layer_bottom"]),
                final_ln_g=params["tail"]["final_ln_g"],
                final_ln_b=params["tail"]["final_ln_b"],
                lm_head_w=params["tail"]["lm_head_w"].astype(jnp.bfloat16))
    return dict(head=head, segments=segments, tail=tail)


# --------------------------------------------------------------------------
# Pure-JAX f32 reference (for a loose end-to-end numeric check)
# --------------------------------------------------------------------------

def _ref_ln(x, g, b):
    mu = jnp.mean(x, axis=-1, keepdims=True)
    var = jnp.mean(jnp.square(x - mu), axis=-1, keepdims=True)
    return (x - mu) * jax.lax.rsqrt(var + 1e-5) * g + b


def _ref_attention(q, k, v):
    hd = q.shape[-1]
    group = q.shape[1] // k.shape[1]
    k = jnp.repeat(k, group, axis=1)
    v = jnp.repeat(v, group, axis=1)
    s = jnp.einsum("bhqd,bhkd->bhqk", q, k) / (hd ** 0.5)
    p = jax.nn.softmax(s, axis=-1)
    return jnp.einsum("bhqk,bhkd->bhqd", p, v)


def _ref_layer_head(p, hidden, rope, cfg):
    h = _ref_ln(hidden, p["ln1_g"], p["ln1_b"])
    q = h @ p["q_w"] + p["q_b"]
    k = h @ p["k_w"] + p["k_b"]
    v = h @ p["v_w"] + p["v_b"]
    B, T, _ = hidden.shape
    hd = cfg["head_dim"]
    q = q.reshape(B, T, cfg["num_heads"], hd).transpose(0, 2, 1, 3)
    k = k.reshape(B, T, cfg["num_kv_heads"], hd).transpose(0, 2, 1, 3)
    v = v.reshape(B, T, cfg["num_kv_heads"], hd).transpose(0, 2, 1, 3)
    q, k = apply_rotary_pos_emb(q, k, rope)
    return hidden, q, k, v


def _ref_layer_bottom(p, residual, q, ks, vs, cfg):
    a = _ref_attention(q, ks, vs)
    B, nh, Tq, hd = a.shape
    a = a.transpose(0, 2, 1, 3).reshape(B, Tq, nh * hd)
    a = a @ p["out_w"] + p["out_b"]
    hidden = a + residual
    h = _ref_ln(hidden, p["ln2_g"], p["ln2_b"])
    g = h @ p["gate_w"] + p["gate_b"]
    u = h @ p["up_w"] + p["up_b"]
    m = (g * jax.nn.sigmoid(g)) * u
    return (m @ p["down_w"] + p["down_b"]) + hidden


def _ref_forward(params, input_ids, rope, past_ks, past_vs, cfg):
    hidden = jnp.take(params["head"]["embedding"], input_ids, axis=0)
    residual, q, k, v = _ref_layer_head(params["head"]["layer_head"],
                                        hidden, rope, cfg)
    n = len(params["segments"])
    for i in range(n):
        ks = jnp.concatenate([past_ks[i], k], axis=2)
        vs = jnp.concatenate([past_vs[i], v], axis=2)
        h = _ref_layer_bottom(params["segments"][i]["layer_bottom"],
                              residual, q, ks, vs, cfg)
        residual, q, k, v = _ref_layer_head(params["segments"][i]["layer_head"],
                                            h, rope, cfg)
    ks = jnp.concatenate([past_ks[n], k], axis=2)
    vs = jnp.concatenate([past_vs[n], v], axis=2)
    h = _ref_layer_bottom(params["tail"]["layer_bottom"], residual, q, ks, vs, cfg)
    h = _ref_ln(h, params["tail"]["final_ln_g"], params["tail"]["final_ln_b"])
    return h @ params["tail"]["lm_head_w"]


# --------------------------------------------------------------------------
# Main
# --------------------------------------------------------------------------

if __name__ == "__main__":
    cfg = dict(hidden_size=32, num_heads=4, num_kv_heads=2, head_dim=8,
               num_layers=3, vocab_size=64, intermediate_size=64)

    B, T, PAST = 2, 8, 8
    key = jax.random.PRNGKey(0)
    kp, ki, kk, kv = jax.random.split(key, 4)

    params = init_params(kp, cfg)
    fast_params = prepare_params(params, cfg)   # fuse qkv, fold scale, bf16

    input_ids = jax.random.randint(ki, (B, T), 0, cfg["vocab_size"], jnp.int32)

    # rotary_pos_emb: (2, 1, T, head_dim) -> [cos, sin] for the T new positions
    hd = cfg["head_dim"]
    positions = jnp.arange(PAST, PAST + T, dtype=jnp.float32)
    inv_freq = 1.0 / (10000.0 ** (jnp.arange(0, hd, 2, dtype=jnp.float32) / hd))
    freqs = positions[:, None] * inv_freq[None, :]            # (T, hd/2)
    emb = jnp.concatenate([freqs, freqs], axis=-1)            # (T, hd)
    rope = jnp.stack([jnp.cos(emb), jnp.sin(emb)], axis=0)[:, None]  # (2,1,T,hd)

    past_shape = (cfg["num_layers"], B, cfg["num_kv_heads"], PAST, hd)
    past_ks = 0.1 * jax.random.normal(kk, past_shape, jnp.float32)
    past_vs = 0.1 * jax.random.normal(kv, past_shape, jnp.float32)

    fwd = jax.jit(functools.partial(segmented_klm_forward, cfg=cfg))
    logits, new_k, new_v = fwd(fast_params, input_ids, rope, past_ks, past_vs)
    jax.block_until_ready((logits, new_k, new_v))

    assert logits.shape == (B, T, cfg["vocab_size"])
    assert new_k.shape == (cfg["num_layers"], B, cfg["num_kv_heads"], PAST + T, hd)
    assert new_v.shape == new_k.shape

    # Loose end-to-end check vs. an f32 pure-JAX reference (bf16 MXU operands,
    # bf16 KV/rope path and approx softmax reciprocal -> ~0.1-1% rel. error).
    ref_logits = _ref_forward(params, input_ids, rope, past_ks, past_vs, cfg)
    max_err = float(jnp.max(jnp.abs(logits - ref_logits)))
    assert jnp.allclose(logits, ref_logits, atol=3e-2, rtol=5e-2), max_err

    print("KERNEL_OK")
</pallas_src>

<mosaic_0001>
module attributes {stable_mosaic.version = 11 : i64} {
  func.func @_ln_dense_bias_kernel(%arg0: i32, %arg1: i32, %arg2: memref<16x32xf32, #tpu.memory_space<vmem>>, %arg3: memref<1x32xf32, #tpu.memory_space<vmem>>, %arg4: memref<1x32xf32, #tpu.memory_space<vmem>>, %arg5: memref<32x64xbf16, #tpu.memory_space<vmem>>, %arg6: memref<1x64xf32, #tpu.memory_space<vmem>>, %arg7: memref<16x64xbf16, #tpu.memory_space<vmem>>, %arg8: memref<16x32xbf16, #tpu.memory_space<vmem>>) attributes {dimension_semantics = [#tpu.dimension_semantics<parallel>, #tpu.dimension_semantics<arbitrary>], iteration_bounds = array<i64: 1, 1>, scalar_prefetch = 0 : i64, scratch_operands = 1 : i64, tpu.core_type = #tpu.core_type<tc>, window_params = [{transform_indices = @transform_0, window_bounds = array<i64: 16, 32>}, {pipeline_mode = #tpu.pipeline_mode<synchronous>, transform_indices = @transform_1, window_bounds = array<i64: 1, 32>}, {pipeline_mode = #tpu.pipeline_mode<synchronous>, transform_indices = @transform_2, window_bounds = array<i64: 1, 32>}, {transform_indices = @transform_3, window_bounds = array<i64: 32, 64>}, {transform_indices = @transform_4, window_bounds = array<i64: 1, 64>}, {transform_indices = @transform_5, window_bounds = array<i64: 16, 64>}]} {
    %c0_i32 = arith.constant 0 : i32
    %0 = arith.cmpi eq, %arg1, %c0_i32 : i32
    %1 = arith.extui %0 : i1 to i32
    %c0_i32_0 = arith.constant 0 : i32
    %2 = arith.cmpi ne, %1, %c0_i32_0 : i32
    scf.if %2 {
      %c0_8 = arith.constant 0 : index
      %c0_9 = arith.constant 0 : index
      %11 = vector.load %arg2[%c0_8, %c0_9] : memref<16x32xf32, #tpu.memory_space<vmem>>, vector<16x32xf32>
      %c0_10 = arith.constant 0 : index
      %c0_11 = arith.constant 0 : index
      %12 = vector.load %arg3[%c0_10, %c0_11] : memref<1x32xf32, #tpu.memory_space<vmem>>, vector<1x32xf32>
      %c0_12 = arith.constant 0 : index
      %c0_13 = arith.constant 0 : index
      %13 = vector.load %arg4[%c0_12, %c0_13] : memref<1x32xf32, #tpu.memory_space<vmem>>, vector<1x32xf32>
      %cst_14 = arith.constant dense<0.000000e+00> : vector<16xf32>
      %14 = vector.multi_reduction <add>, %11, %cst_14 [1] : vector<16x32xf32> to vector<16xf32>
      %15 = vector.shape_cast %14 : vector<16xf32> to vector<16x1xf32>
      %cst_15 = arith.constant 3.200000e+01 : f32
      %16 = vector.broadcast %cst_15 : f32 to vector<16x1xf32>
      %17 = arith.divf %15, %16 : vector<16x1xf32>
      %18 = vector.broadcast %17 : vector<16x1xf32> to vector<16x32xf32>
      %19 = arith.subf %11, %18 : vector<16x32xf32>
      %20 = arith.mulf %19, %19 : vector<16x32xf32>
      %cst_16 = arith.constant dense<0.000000e+00> : vector<16xf32>
      %21 = vector.multi_reduction <add>, %20, %cst_16 [1] : vector<16x32xf32> to vector<16xf32>
      %22 = vector.shape_cast %21 : vector<16xf32> to vector<16x1xf32>
      %cst_17 = arith.constant 3.200000e+01 : f32
      %23 = vector.broadcast %cst_17 : f32 to vector<16x1xf32>
      %24 = arith.divf %22, %23 : vector<16x1xf32>
      %25 = vector.broadcast %17 : vector<16x1xf32> to vector<16x32xf32>
      %26 = arith.subf %11, %25 : vector<16x32xf32>
      %cst_18 = arith.constant 9.99999974E-6 : f32
      %27 = vector.broadcast %cst_18 : f32 to vector<16x1xf32>
      %28 = arith.addf %24, %27 : vector<16x1xf32>
      %29 = math.rsqrt %28 : vector<16x1xf32>
      %30 = vector.broadcast %29 : vector<16x1xf32> to vector<16x32xf32>
      %31 = arith.mulf %26, %30 : vector<16x32xf32>
      %32 = vector.broadcast %12 : vector<1x32xf32> to vector<16x32xf32>
      %33 = arith.mulf %31, %32 : vector<16x32xf32>
      %34 = vector.broadcast %13 : vector<1x32xf32> to vector<16x32xf32>
      %35 = arith.addf %33, %34 : vector<16x32xf32>
      %36 = arith.truncf %35 : vector<16x32xf32> to vector<16x32xbf16>
      %c0_19 = arith.constant 0 : index
      %c0_20 = arith.constant 0 : index
      %37 = vector.load %arg8[%c0_19, %c0_20] : memref<16x32xbf16, #tpu.memory_space<vmem>>, vector<16x32xbf16>
      tpu.vector_store %arg8[%c0_19, %c0_20], %36 {strides = array<i32>} : memref<16x32xbf16, #tpu.memory_space<vmem>>, vector<16x32xbf16>,
    } else {
    }
    %c0 = arith.constant 0 : index
    %c0_1 = arith.constant 0 : index
    %3 = vector.load %arg8[%c0, %c0_1] : memref<16x32xbf16, #tpu.memory_space<vmem>>, vector<16x32xbf16>
    %c0_2 = arith.constant 0 : index
    %c0_3 = arith.constant 0 : index
    %4 = vector.load %arg5[%c0_2, %c0_3] : memref<32x64xbf16, #tpu.memory_space<vmem>>, vector<32x64xbf16>
    %cst = arith.constant dense<0.000000e+00> : vector<16x64xf32>
    %5 = tpu.matmul %3, %4, %cst {dimension_numbers = #tpu.dot_dimension_numbers<[1], [0], [0], [1], [0, 0, 1, 1], [], []>} : vector<16x32xbf16>, vector<32x64xbf16>, vector<16x64xf32> -> vector<16x64xf32>
    %c0_4 = arith.constant 0 : index
    %c0_5 = arith.constant 0 : index
    %6 = vector.load %arg6[%c0_4, %c0_5] : memref<1x64xf32, #tpu.memory_space<vmem>>, vector<1x64xf32>
    %7 = vector.broadcast %6 : vector<1x64xf32> to vector<16x64xf32>
    %8 = arith.addf %5, %7 : vector<16x64xf32>
    %9 = arith.truncf %8 : vector<16x64xf32> to vector<16x64xbf16>
    %c0_6 = arith.constant 0 : index
    %c0_7 = arith.constant 0 : index
    %10 = vector.load %arg7[%c0_6, %c0_7] : memref<16x64xbf16, #tpu.memory_space<vmem>>, vector<16x64xbf16>
    tpu.vector_store %arg7[%c0_6, %c0_7], %9 {strides = array<i32>} : memref<16x64xbf16, #tpu.memory_space<vmem>>, vector<16x64xbf16>,
    return
  }
  func.func @transform_0(%arg0: i32, %arg1: i32) -> (i32, i32) {
    %c0_i32 = arith.constant 0 : i32
    %c0_i32_0 = arith.constant 0 : i32
    return %arg0, %c0_i32 : i32, i32
  }
  func.func @transform_1(%arg0: i32, %arg1: i32) -> (i32, i32) {
    %c0_i32 = arith.constant 0 : i32
    %c0_i32_0 = arith.constant 0 : i32
    %c0_i32_1 = arith.constant 0 : i32
    return %c0_i32, %c0_i32_0 : i32, i32
  }
  func.func @transform_2(%arg0: i32, %arg1: i32) -> (i32, i32) {
    %c0_i32 = arith.constant 0 : i32
    %c0_i32_0 = arith.constant 0 : i32
    %c0_i32_1 = arith.constant 0 : i32
    return %c0_i32, %c0_i32_0 : i32, i32
  }
  func.func @transform_3(%arg0: i32, %arg1: i32) -> (i32, i32) {
    %c0_i32 = arith.constant 0 : i32
    %c0_i32_0 = arith.constant 0 : i32
    return %c0_i32, %arg1 : i32, i32
  }
  func.func @transform_4(%arg0: i32, %arg1: i32) -> (i32, i32) {
    %c0_i32 = arith.constant 0 : i32
    %c0_i32_0 = arith.constant 0 : i32
    return %c0_i32, %arg1 : i32, i32
  }
  func.func @transform_5(%arg0: i32, %arg1: i32) -> (i32, i32) {
    %c0_i32 = arith.constant 0 : i32
    return %arg0, %arg1 : i32, i32
  }
}

module attributes {stable_mosaic.version = 11 : i64} {
  func.func @_flash_attn_kernel(%arg0: i32, %arg1: i32, %arg2: i32, %arg3: memref<1x16x8xbf16, #tpu.memory_space<vmem>>, %arg4: memref<1x16x8xbf16, #tpu.memory_space<vmem>>, %arg5: memref<1x16x8xbf16, #tpu.memory_space<vmem>>, %arg6: memref<1x16x8xbf16, #tpu.memory_space<vmem>>, %arg7: memref<16x1xf32, #tpu.memory_space<vmem>>, %arg8: memref<16x1xf32, #tpu.memory_space<vmem>>, %arg9: memref<16x8xf32, #tpu.memory_space<vmem>>) attributes {dimension_semantics = [#tpu.dimension_semantics<parallel>, #tpu.dimension_semantics<parallel>, #tpu.dimension_semantics<arbitrary>], iteration_bounds = array<i64: 4, 1, 1>, scalar_prefetch = 0 : i64, scratch_operands = 3 : i64, tpu.core_type = #tpu.core_type<tc>, window_params = [{transform_indices = @transform_0, window_bounds = array<i64: 1, 16, 8>}, {transform_indices = @transform_1, window_bounds = array<i64: 1, 16, 8>}, {transform_indices = @transform_2, window_bounds = array<i64: 1, 16, 8>}, {transform_indices = @transform_3, window_bounds = array<i64: 1, 16, 8>}]} {
    %c0_i32 = arith.constant 0 : i32
    %0 = arith.cmpi eq, %arg2, %c0_i32 : i32
    %1 = arith.extui %0 : i1 to i32
    %c0_i32_0 = arith.constant 0 : i32
    %2 = arith.cmpi ne, %1, %c0_i32_0 : i32
    scf.if %2 {
      %cst_26 = arith.constant 0xFF800000 : f32
      %36 = vector.broadcast %cst_26 : f32 to vector<16x1xf32>
      %c0_27 = arith.constant 0 : index
      %c0_28 = arith.constant 0 : index
      %37 = vector.load %arg7[%c0_27, %c0_28] : memref<16x1xf32, #tpu.memory_space<vmem>>, vector<16x1xf32>
      tpu.vector_store %arg7[%c0_27, %c0_28], %36 {strides = array<i32>} : memref<16x1xf32, #tpu.memory_space<vmem>>, vector<16x1xf32>,
      %cst_29 = arith.constant 0.000000e+00 : f32
      %38 = vector.broadcast %cst_29 : f32 to vector<16x1xf32>
      %c0_30 = arith.constant 0 : index
      %c0_31 = arith.constant 0 : index
      %39 = vector.load %arg8[%c0_30, %c0_31] : memref<16x1xf32, #tpu.memory_space<vmem>>, vector<16x1xf32>
      tpu.vector_store %arg8[%c0_30, %c0_31], %38 {strides = array<i32>} : memref<16x1xf32, #tpu.memory_space<vmem>>, vector<16x1xf32>,
      %cst_32 = arith.constant 0.000000e+00 : f32
      %40 = vector.broadcast %cst_32 : f32 to vector<16x8xf32>
      %c0_33 = arith.constant 0 : index
      %c0_34 = arith.constant 0 : index
      %41 = vector.load %arg9[%c0_33, %c0_34] : memref<16x8xf32, #tpu.memory_space<vmem>>, vector<16x8xf32>
      tpu.vector_store %arg9[%c0_33, %c0_34], %40 {strides = array<i32>} : memref<16x8xf32, #tpu.memory_space<vmem>>, vector<16x8xf32>,
    } else {
    }
    %c0 = arith.constant 0 : index
    %c0_1 = arith.constant 0 : index
    %c0_2 = arith.constant 0 : index
    %3 = vector.load %arg3[%c0, %c0_1, %c0_2] : memref<1x16x8xbf16, #tpu.memory_space<vmem>>, vector<1x16x8xbf16>
    %4 = vector.shape_cast %3 : vector<1x16x8xbf16> to vector<16x8xbf16>
    %c0_3 = arith.constant 0 : index
    %c0_4 = arith.constant 0 : index
    %c0_5 = arith.constant 0 : index
    %5 = vector.load %arg4[%c0_3, %c0_4, %c0_5] : memref<1x16x8xbf16, #tpu.memory_space<vmem>>, vector<1x16x8xbf16>
    %6 = vector.shape_cast %5 : vector<1x16x8xbf16> to vector<16x8xbf16>
    %c0_6 = arith.constant 0 : index
    %c0_7 = arith.constant 0 : index
    %c0_8 = arith.constant 0 : index
    %7 = vector.load %arg5[%c0_6, %c0_7, %c0_8] : memref<1x16x8xbf16, #tpu.memory_space<vmem>>, vector<1x16x8xbf16>
    %8 = vector.shape_cast %7 : vector<1x16x8xbf16> to vector<16x8xbf16>
    %cst = arith.constant dense<0.000000e+00> : vector<16x16xf32>
    %9 = tpu.matmul %4, %6, %cst {dimension_numbers = #tpu.dot_dimension_numbers<[1], [1], [0], [0], [0, 0, 1, 0], [], []>} : vector<16x8xbf16>, vector<16x8xbf16>, vector<16x16xf32> -> vector<16x16xf32>
    %c0_9 = arith.constant 0 : index
    %c0_10 = arith.constant 0 : index
    %10 = vector.load %arg7[%c0_9, %c0_10] : memref<16x1xf32, #tpu.memory_space<vmem>>, vector<16x1xf32>
    %cst_11 = arith.constant dense<0xFF800000> : vector<16xf32>
    %11 = vector.multi_reduction <maximumf>, %9, %cst_11 [1] : vector<16x16xf32> to vector<16xf32>
    %12 = vector.shape_cast %11 : vector<16xf32> to vector<16x1xf32>
    %13 = arith.maximumf %10, %12 : vector<16x1xf32>
    %14 = arith.subf %10, %13 : vector<16x1xf32>
    %15 = math.exp %14 : vector<16x1xf32>
    %16 = vector.broadcast %13 : vector<16x1xf32> to vector<16x16xf32>
    %17 = arith.subf %9, %16 : vector<16x16xf32>
    %18 = math.exp %17 : vector<16x16xf32>
    %c0_12 = arith.constant 0 : index
    %c0_13 = arith.constant 0 : index
    %19 = vector.load %arg8[%c0_12, %c0_13] : memref<16x1xf32, #tpu.memory_space<vmem>>, vector<16x1xf32>
    %20 = arith.mulf %15, %19 : vector<16x1xf32>
    %cst_14 = arith.constant dense<0.000000e+00> : vector<16xf32>
    %21 = vector.multi_reduction <add>, %18, %cst_14 [1] : vector<16x16xf32> to vector<16xf32>
    %22 = vector.shape_cast %21 : vector<16xf32> to vector<16x1xf32>
    %23 = arith.addf %20, %22 : vector<16x1xf32>
    %c0_15 = arith.constant 0 : index
    %c0_16 = arith.constant 0 : index
    %24 = vector.load %arg8[%c0_15, %c0_16] : memref<16x1xf32, #tpu.memory_space<vmem>>, vector<16x1xf32>
    tpu.vector_store %arg8[%c0_15, %c0_16], %23 {strides = array<i32>} : memref<16x1xf32, #tpu.memory_space<vmem>>, vector<16x1xf32>,
    %c0_17 = arith.constant 0 : index
    %c0_18 = arith.constant 0 : index
    %25 = vector.load %arg9[%c0_17, %c0_18] : memref<16x8xf32, #tpu.memory_space<vmem>>, vector<16x8xf32>
    %26 = vector.broadcast %15 : vector<16x1xf32> to vector<16x8xf32>
    %27 = arith.mulf %26, %25 : vector<16x8xf32>
    %28 = arith.truncf %18 : vector<16x16xf32> to vector<16x16xbf16>
    %cst_19 = arith.constant dense<0.000000e+00> : vector<16x8xf32>
    %29 = tpu.matmul %28, %8, %cst_19 {dimension_numbers = #tpu.dot_dimension_numbers<[1], [0], [0], [1], [0, 0, 1, 1], [], []>} : vector<16x16xbf16>, vector<16x8xbf16>, vector<16x8xf32> -> vector<16x8xf32>
    %30 = arith.addf %27, %29 : vector<16x8xf32>
    %c0_20 = arith.constant 0 : index
    %c0_21 = arith.constant 0 : index
    %31 = vector.load %arg9[%c0_20, %c0_21] : memref<16x8xf32, #tpu.memory_space<vmem>>, vector<16x8xf32>
    tpu.vector_store %arg9[%c0_20, %c0_21], %30 {strides = array<i32>} : memref<16x8xf32, #tpu.memory_space<vmem>>, vector<16x8xf32>,
    %c0_22 = arith.constant 0 : index
    %c0_23 = arith.constant 0 : index
    %32 = vector.load %arg7[%c0_22, %c0_23] : memref<16x1xf32, #tpu.memory_space<vmem>>, vector<16x1xf32>
    tpu.vector_store %arg7[%c0_22, %c0_23], %13 {strides = array<i32>} : memref<16x1xf32, #tpu.memory_space<vmem>>, vector<16x1xf32>,
    %c0_i32_24 = arith.constant 0 : i32
    %33 = arith.cmpi eq, %arg2, %c0_i32_24 : i32
    %34 = arith.extui %33 : i1 to i32
    %c0_i32_25 = arith.constant 0 : i32
    %35 = arith.cmpi ne, %34, %c0_i32_25 : i32
    scf.if %35 {
      %c0_26 = arith.constant 0 : index
      %c0_27 = arith.constant 0 : index
      %36 = vector.load %arg9[%c0_26, %c0_27] : memref<16x8xf32, #tpu.memory_space<vmem>>, vector<16x8xf32>
      %c0_28 = arith.constant 0 : index
      %c0_29 = arith.constant 0 : index
      %37 = vector.load %arg8[%c0_28, %c0_29] : memref<16x1xf32, #tpu.memory_space<vmem>>, vector<16x1xf32>
      %38 = tpu.reciprocal %37 {approx = true} : vector<16x1xf32> -> vector<16x1xf32>
      %39 = vector.broadcast %38 : vector<16x1xf32> to vector<16x8xf32>
      %40 = arith.mulf %36, %39 : vector<16x8xf32>
      %41 = arith.truncf %40 : vector<16x8xf32> to vector<16x8xbf16>
      %c0_30 = arith.constant 0 : index
      %c0_31 = arith.constant 0 : index
      %c0_32 = arith.constant 0 : index
      %42 = vector.load %arg6[%c0_30, %c0_31, %c0_32] : memref<1x16x8xbf16, #tpu.memory_space<vmem>>, vector<1x16x8xbf16>
      %43 = vector.shape_cast %42 : vector<1x16x8xbf16> to vector<16x8xbf16>
      %44 = vector.shape_cast %41 : vector<16x8xbf16> to vector<1x16x8xbf16>
      tpu.vector_store %arg6[%c0_30, %c0_31, %c0_32], %44 {strides = array<i32>} : memref<1x16x8xbf16, #tpu.memory_space<vmem>>, vector<1x16x8xbf16>,
    } else {
    }
    return
  }
  func.func @transform_0(%arg0: i32, %arg1: i32, %arg2: i32) -> (i32, i32, i32) {
    %c0_i32 = arith.constant 0 : i32
    %c0_i32_0 = arith.constant 0 : i32
    return %arg0, %arg1, %c0_i32 : i32, i32, i32
  }
  func.func @transform_1(%arg0: i32, %arg1: i32, %arg2: i32) -> (i32, i32, i32) {
    %c0_i32 = arith.constant 0 : i32
    %c0_i32_0 = arith.constant 0 : i32
    return %arg0, %arg2, %c0_i32 : i32, i32, i32
  }
  func.func @transform_2(%arg0: i32, %arg1: i32, %arg2: i32) -> (i32, i32, i32) {
    %c0_i32 = arith.constant 0 : i32
    %c0_i32_0 = arith.constant 0 : i32
    return %arg0, %arg2, %c0_i32 : i32, i32, i32
  }
  func.func @transform_3(%arg0: i32, %arg1: i32, %arg2: i32) -> (i32, i32, i32) {
    %c0_i32 = arith.constant 0 : i32
    %c0_i32_0 = arith.constant 0 : i32
    return %arg0, %arg1, %c0_i32 : i32, i32, i32
  }
}

module attributes {stable_mosaic.version = 11 : i64} {
  func.func @_dense_res_kernel(%arg0: i32, %arg1: i32, %arg2: i32, %arg3: memref<16x32xbf16, #tpu.memory_space<vmem>>, %arg4: memref<32x32xbf16, #tpu.memory_space<vmem>>, %arg5: memref<1x32xf32, #tpu.memory_space<vmem>>, %arg6: memref<16x32xf32, #tpu.memory_space<vmem>>, %arg7: memref<16x32xf32, #tpu.memory_space<vmem>>) attributes {dimension_semantics = [#tpu.dimension_semantics<parallel>, #tpu.dimension_semantics<parallel>, #tpu.dimension_semantics<arbitrary>], iteration_bounds = array<i64: 1, 1, 1>, scalar_prefetch = 0 : i64, scratch_operands = 0 : i64, tpu.core_type = #tpu.core_type<tc>, window_params = [{transform_indices = @transform_0, window_bounds = array<i64: 16, 32>}, {transform_indices = @transform_1, window_bounds = array<i64: 32, 32>}, {transform_indices = @transform_2, window_bounds = array<i64: 1, 32>}, {transform_indices = @transform_3, window_bounds = array<i64: 16, 32>}, {transform_indices = @transform_4, window_bounds = array<i64: 16, 32>}]} {
    %c0 = arith.constant 0 : index
    %c0_0 = arith.constant 0 : index
    %0 = vector.load %arg3[%c0, %c0_0] : memref<16x32xbf16, #tpu.memory_space<vmem>>, vector<16x32xbf16>
    %c0_1 = arith.constant 0 : index
    %c0_2 = arith.constant 0 : index
    %1 = vector.load %arg4[%c0_1, %c0_2] : memref<32x32xbf16, #tpu.memory_space<vmem>>, vector<32x32xbf16>
    %cst = arith.constant dense<0.000000e+00> : vector<16x32xf32>
    %2 = tpu.matmul %0, %1, %cst {dimension_numbers = #tpu.dot_dimension_numbers<[1], [0], [0], [1], [0, 0, 1, 1], [], []>} : vector<16x32xbf16>, vector<32x32xbf16>, vector<16x32xf32> -> vector<16x32xf32>
    %c0_i32 = arith.constant 0 : i32
    %3 = arith.cmpi eq, %arg2, %c0_i32 : i32
    %4 = arith.extui %3 : i1 to i32
    %c0_i32_3 = arith.constant 0 : i32
    %5 = arith.cmpi ne, %4, %c0_i32_3 : i32
    scf.if %5 {
      %c0_6 = arith.constant 0 : index
      %c0_7 = arith.constant 0 : index
      %9 = vector.load %arg5[%c0_6, %c0_7] : memref<1x32xf32, #tpu.memory_space<vmem>>, vector<1x32xf32>
      %10 = vector.broadcast %9 : vector<1x32xf32> to vector<16x32xf32>
      %11 = arith.addf %2, %10 : vector<16x32xf32>
      %c0_8 = arith.constant 0 : index
      %c0_9 = arith.constant 0 : index
      %12 = vector.load %arg6[%c0_8, %c0_9] : memref<16x32xf32, #tpu.memory_space<vmem>>, vector<16x32xf32>
      %13 = arith.addf %11, %12 : vector<16x32xf32>
      %c0_10 = arith.constant 0 : index
      %c0_11 = arith.constant 0 : index
      %14 = vector.load %arg7[%c0_10, %c0_11] : memref<16x32xf32, #tpu.memory_space<vmem>>, vector<16x32xf32>
      tpu.vector_store %arg7[%c0_10, %c0_11], %13 {strides = array<i32>} : memref<16x32xf32, #tpu.memory_space<vmem>>, vector<16x32xf32>,
    } else {
    }
    %c0_i32_4 = arith.constant 0 : i32
    %6 = arith.cmpi ne, %arg2, %c0_i32_4 : i32
    %7 = arith.extui %6 : i1 to i32
    %c0_i32_5 = arith.constant 0 : i32
    %8 = arith.cmpi ne, %7, %c0_i32_5 : i32
    scf.if %8 {
      %c0_6 = arith.constant 0 : index
      %c0_7 = arith.constant 0 : index
      %9 = vector.load %arg7[%c0_6, %c0_7] : memref<16x32xf32, #tpu.memory_space<vmem>>, vector<16x32xf32>
      %10 = arith.addf %9, %2 : vector<16x32xf32>
      %c0_8 = arith.constant 0 : index
      %c0_9 = arith.constant 0 : index
      %11 = vector.load %arg7[%c0_8, %c0_9] : memref<16x32xf32, #tpu.memory_space<vmem>>, vector<16x32xf32>
      tpu.vector_store %arg7[%c0_8, %c0_9], %10 {strides = array<i32>} : memref<16x32xf32, #tpu.memory_space<vmem>>, vector<16x32xf32>,
    } else {
    }
    return
  }
  func.func @transform_0(%arg0: i32, %arg1: i32, %arg2: i32) -> (i32, i32) {
    %c0_i32 = arith.constant 0 : i32
    return %arg0, %arg2 : i32, i32
  }
  func.func @transform_1(%arg0: i32, %arg1: i32, %arg2: i32) -> (i32, i32) {
    %c0_i32 = arith.constant 0 : i32
    return %arg2, %arg1 : i32, i32
  }
  func.func @transform_2(%arg0: i32, %arg1: i32, %arg2: i32) -> (i32, i32) {
    %c0_i32 = arith.constant 0 : i32
    %c0_i32_0 = arith.constant 0 : i32
    return %c0_i32, %arg1 : i32, i32
  }
  func.func @transform_3(%arg0: i32, %arg1: i32, %arg2: i32) -> (i32, i32) {
    %c0_i32 = arith.constant 0 : i32
    return %arg0, %arg1 : i32, i32
  }
  func.func @transform_4(%arg0: i32, %arg1: i32, %arg2: i32) -> (i32, i32) {
    %c0_i32 = arith.constant 0 : i32
    return %arg0, %arg1 : i32, i32
  }
}

module attributes {stable_mosaic.version = 11 : i64} {
  func.func @_ln_mlp_kernel(%arg0: i32, %arg1: i32, %arg2: memref<16x32xf32, #tpu.memory_space<vmem>>, %arg3: memref<1x32xf32, #tpu.memory_space<vmem>>, %arg4: memref<1x32xf32, #tpu.memory_space<vmem>>, %arg5: memref<32x64xbf16, #tpu.memory_space<vmem>>, %arg6: memref<1x64xf32, #tpu.memory_space<vmem>>, %arg7: memref<32x64xbf16, #tpu.memory_space<vmem>>, %arg8: memref<1x64xf32, #tpu.memory_space<vmem>>, %arg9: memref<64x32xbf16, #tpu.memory_space<vmem>>, %arg10: memref<1x32xf32, #tpu.memory_space<vmem>>, %arg11: memref<16x32xf32, #tpu.memory_space<vmem>>, %arg12: memref<16x32xbf16, #tpu.memory_space<vmem>>) attributes {dimension_semantics = [#tpu.dimension_semantics<parallel>, #tpu.dimension_semantics<arbitrary>], iteration_bounds = array<i64: 1, 1>, scalar_prefetch = 0 : i64, scratch_operands = 1 : i64, tpu.core_type = #tpu.core_type<tc>, window_params = [{transform_indices = @transform_0, window_bounds = array<i64: 16, 32>}, {pipeline_mode = #tpu.pipeline_mode<synchronous>, transform_indices = @transform_1, window_bounds = array<i64: 1, 32>}, {pipeline_mode = #tpu.pipeline_mode<synchronous>, transform_indices = @transform_2, window_bounds = array<i64: 1, 32>}, {transform_indices = @transform_3, window_bounds = array<i64: 32, 64>}, {transform_indices = @transform_4, window_bounds = array<i64: 1, 64>}, {transform_indices = @transform_5, window_bounds = array<i64: 32, 64>}, {transform_indices = @transform_6, window_bounds = array<i64: 1, 64>}, {transform_indices = @transform_7, window_bounds = array<i64: 64, 32>}, {pipeline_mode = #tpu.pipeline_mode<synchronous>, transform_indices = @transform_8, window_bounds = array<i64: 1, 32>}, {transform_indices = @transform_9, window_bounds = array<i64: 16, 32>}]} {
    %c0_i32 = arith.constant 0 : i32
    %0 = arith.cmpi eq, %arg1, %c0_i32 : i32
    %1 = arith.extui %0 : i1 to i32
    %c0_i32_0 = arith.constant 0 : i32
    %2 = arith.cmpi ne, %1, %c0_i32_0 : i32
    scf.if %2 {
      %c0_19 = arith.constant 0 : index
      %c0_20 = arith.constant 0 : index
      %30 = vector.load %arg2[%c0_19, %c0_20] : memref<16x32xf32, #tpu.memory_space<vmem>>, vector<16x32xf32>
      %c0_21 = arith.constant 0 : index
      %c0_22 = arith.constant 0 : index
      %31 = vector.load %arg3[%c0_21, %c0_22] : memref<1x32xf32, #tpu.memory_space<vmem>>, vector<1x32xf32>
      %c0_23 = arith.constant 0 : index
      %c0_24 = arith.constant 0 : index
      %32 = vector.load %arg4[%c0_23, %c0_24] : memref<1x32xf32, #tpu.memory_space<vmem>>, vector<1x32xf32>
      %cst_25 = arith.constant dense<0.000000e+00> : vector<16xf32>
      %33 = vector.multi_reduction <add>, %30, %cst_25 [1] : vector<16x32xf32> to vector<16xf32>
      %34 = vector.shape_cast %33 : vector<16xf32> to vector<16x1xf32>
      %cst_26 = arith.constant 3.200000e+01 : f32
      %35 = vector.broadcast %cst_26 : f32 to vector<16x1xf32>
      %36 = arith.divf %34, %35 : vector<16x1xf32>
      %37 = vector.broadcast %36 : vector<16x1xf32> to vector<16x32xf32>
      %38 = arith.subf %30, %37 : vector<16x32xf32>
      %39 = arith.mulf %38, %38 : vector<16x32xf32>
      %cst_27 = arith.constant dense<0.000000e+00> : vector<16xf32>
      %40 = vector.multi_reduction <add>, %39, %cst_27 [1] : vector<16x32xf32> to vector<16xf32>
      %41 = vector.shape_cast %40 : vector<16xf32> to vector<16x1xf32>
      %cst_28 = arith.constant 3.200000e+01 : f32
      %42 = vector.broadcast %cst_28 : f32 to vector<16x1xf32>
      %43 = arith.divf %41, %42 : vector<16x1xf32>
      %44 = vector.broadcast %36 : vector<16x1xf32> to vector<16x32xf32>
      %45 = arith.subf %30, %44 : vector<16x32xf32>
      %cst_29 = arith.constant 9.99999974E-6 : f32
      %46 = vector.broadcast %cst_29 : f32 to vector<16x1xf32>
      %47 = arith.addf %43, %46 : vector<16x1xf32>
      %48 = math.rsqrt %47 : vector<16x1xf32>
      %49 = vector.broadcast %48 : vector<16x1xf32> to vector<16x32xf32>
      %50 = arith.mulf %45, %49 : vector<16x32xf32>
      %51 = vector.broadcast %31 : vector<1x32xf32> to vector<16x32xf32>
      %52 = arith.mulf %50, %51 : vector<16x32xf32>
      %53 = vector.broadcast %32 : vector<1x32xf32> to vector<16x32xf32>
      %54 = arith.addf %52, %53 : vector<16x32xf32>
      %55 = arith.truncf %54 : vector<16x32xf32> to vector<16x32xbf16>
      %c0_30 = arith.constant 0 : index
      %c0_31 = arith.constant 0 : index
      %56 = vector.load %arg12[%c0_30, %c0_31] : memref<16x32xbf16, #tpu.memory_space<vmem>>, vector<16x32xbf16>
      tpu.vector_store %arg12[%c0_30, %c0_31], %55 {strides = array<i32>} : memref<16x32xbf16, #tpu.memory_space<vmem>>, vector<16x32xbf16>,
    } else {
    }
    %c0 = arith.constant 0 : index
    %c0_1 = arith.constant 0 : index
    %3 = vector.load %arg12[%c0, %c0_1] : memref<16x32xbf16, #tpu.memory_space<vmem>>, vector<16x32xbf16>
    %c0_2 = arith.constant 0 : index
    %c0_3 = arith.constant 0 : index
    %4 = vector.load %arg5[%c0_2, %c0_3] : memref<32x64xbf16, #tpu.memory_space<vmem>>, vector<32x64xbf16>
    %cst = arith.constant dense<0.000000e+00> : vector<16x64xf32>
    %5 = tpu.matmul %3, %4, %cst {dimension_numbers = #tpu.dot_dimension_numbers<[1], [0], [0], [1], [0, 0, 1, 1], [], []>} : vector<16x32xbf16>, vector<32x64xbf16>, vector<16x64xf32> -> vector<16x64xf32>
    %c0_4 = arith.constant 0 : index
    %c0_5 = arith.constant 0 : index
    %6 = vector.load %arg6[%c0_4, %c0_5] : memref<1x64xf32, #tpu.memory_space<vmem>>, vector<1x64xf32>
    %7 = vector.broadcast %6 : vector<1x64xf32> to vector<16x64xf32>
    %8 = arith.addf %5, %7 : vector<16x64xf32>
    %c0_6 = arith.constant 0 : index
    %c0_7 = arith.constant 0 : index
    %9 = vector.load %arg7[%c0_6, %c0_7] : memref<32x64xbf16, #tpu.memory_space<vmem>>, vector<32x64xbf16>
    %cst_8 = arith.constant dense<0.000000e+00> : vector<16x64xf32>
    %10 = tpu.matmul %3, %9, %cst_8 {dimension_numbers = #tpu.dot_dimension_numbers<[1], [0], [0], [1], [0, 0, 1, 1], [], []>} : vector<16x32xbf16>, vector<32x64xbf16>, vector<16x64xf32> -> vector<16x64xf32>
    %c0_9 = arith.constant 0 : index
    %c0_10 = arith.constant 0 : index
    %11 = vector.load %arg8[%c0_9, %c0_10] : memref<1x64xf32, #tpu.memory_space<vmem>>, vector<1x64xf32>
    %12 = vector.broadcast %11 : vector<1x64xf32> to vector<16x64xf32>
    %13 = arith.addf %10, %12 : vector<16x64xf32>
    %14 = arith.negf %8 : vector<16x64xf32>
    %15 = math.exp %14 : vector<16x64xf32>
    %cst_11 = arith.constant 1.000000e+00 : f32
    %16 = vector.broadcast %cst_11 : f32 to vector<16x64xf32>
    %17 = arith.addf %16, %15 : vector<16x64xf32>
    %18 = arith.divf %16, %17 : vector<16x64xf32>
    %19 = arith.mulf %8, %18 : vector<16x64xf32>
    %20 = arith.mulf %19, %13 : vector<16x64xf32>
    %21 = arith.truncf %20 : vector<16x64xf32> to vector<16x64xbf16>
    %c0_12 = arith.constant 0 : index
    %c0_13 = arith.constant 0 : index
    %22 = vector.load %arg9[%c0_12, %c0_13] : memref<64x32xbf16, #tpu.memory_space<vmem>>, vector<64x32xbf16>
    %cst_14 = arith.constant dense<0.000000e+00> : vector<16x32xf32>
    %23 = tpu.matmul %21, %22, %cst_14 {dimension_numbers = #tpu.dot_dimension_numbers<[1], [0], [0], [1], [0, 0, 1, 1], [], []>} : vector<16x64xbf16>, vector<64x32xbf16>, vector<16x32xf32> -> vector<16x32xf32>
    %c0_i32_15 = arith.constant 0 : i32
    %24 = arith.cmpi eq, %arg1, %c0_i32_15 : i32
    %25 = arith.extui %24 : i1 to i32
    %c0_i32_16 = arith.constant 0 : i32
    %26 = arith.cmpi ne, %25, %c0_i32_16 : i32
    scf.if %26 {
      %c0_19 = arith.constant 0 : index
      %c0_20 = arith.constant 0 : index
      %30 = vector.load %arg2[%c0_19, %c0_20] : memref<16x32xf32, #tpu.memory_space<vmem>>, vector<16x32xf32>
      %c0_21 = arith.constant 0 : index
      %c0_22 = arith.constant 0 : index
      %31 = vector.load %arg10[%c0_21, %c0_22] : memref<1x32xf32, #tpu.memory_space<vmem>>, vector<1x32xf32>
      %32 = vector.broadcast %31 : vector<1x32xf32> to vector<16x32xf32>
      %33 = arith.addf %30, %32 : vector<16x32xf32>
      %34 = arith.addf %33, %23 : vector<16x32xf32>
      %c0_23 = arith.constant 0 : index
      %c0_24 = arith.constant 0 : index
      %35 = vector.load %arg11[%c0_23, %c0_24] : memref<16x32xf32, #tpu.memory_space<vmem>>, vector<16x32xf32>
      tpu.vector_store %arg11[%c0_23, %c0_24], %34 {strides = array<i32>} : memref<16x32xf32, #tpu.memory_space<vmem>>, vector<16x32xf32>,
    } else {
    }
    %c0_i32_17 = arith.constant 0 : i32
    %27 = arith.cmpi ne, %arg1, %c0_i32_17 : i32
    %28 = arith.extui %27 : i1 to i32
    %c0_i32_18 = arith.constant 0 : i32
    %29 = arith.cmpi ne, %28, %c0_i32_18 : i32
    scf.if %29 {
      %c0_19 = arith.constant 0 : index
      %c0_20 = arith.constant 0 : index
      %30 = vector.load %arg11[%c0_19, %c0_20] : memref<16x32xf32, #tpu.memory_space<vmem>>, vector<16x32xf32>
      %31 = arith.addf %30, %23 : vector<16x32xf32>
      %c0_21 = arith.constant 0 : index
      %c0_22 = arith.constant 0 : index
      %32 = vector.load %arg11[%c0_21, %c0_22] : memref<16x32xf32, #tpu.memory_space<vmem>>, vector<16x32xf32>
      tpu.vector_store %arg11[%c0_21, %c0_22], %31 {strides = array<i32>} : memref<16x32xf32, #tpu.memory_space<vmem>>, vector<16x32xf32>,
    } else {
    }
    return
  }
  func.func @transform_0(%arg0: i32, %arg1: i32) -> (i32, i32) {
    %c0_i32 = arith.constant 0 : i32
    %c0_i32_0 = arith.constant 0 : i32
    return %arg0, %c0_i32 : i32, i32
  }
  func.func @transform_1(%arg0: i32, %arg1: i32) -> (i32, i32) {
    %c0_i32 = arith.constant 0 : i32
    %c0_i32_0 = arith.constant 0 : i32
    %c0_i32_1 = arith.constant 0 : i32
    return %c0_i32, %c0_i32_0 : i32, i32
  }
  func.func @transform_2(%arg0: i32, %arg1: i32) -> (i32, i32) {
    %c0_i32 = arith.constant 0 : i32
    %c0_i32_0 = arith.constant 0 : i32
    %c0_i32_1 = arith.constant 0 : i32
    return %c0_i32, %c0_i32_0 : i32, i32
  }
  func.func @transform_3(%arg0: i32, %arg1: i32) -> (i32, i32) {
    %c0_i32 = arith.constant 0 : i32
    %c0_i32_0 = arith.constant 0 : i32
    return %c0_i32, %arg1 : i32, i32
  }
  func.func @transform_4(%arg0: i32, %arg1: i32) -> (i32, i32) {
    %c0_i32 = arith.constant 0 : i32
    %c0_i32_0 = arith.constant 0 : i32
    return %c0_i32, %arg1 : i32, i32
  }
  func.func @transform_5(%arg0: i32, %arg1: i32) -> (i32, i32) {
    %c0_i32 = arith.constant 0 : i32
    %c0_i32_0 = arith.constant 0 : i32
    return %c0_i32, %arg1 : i32, i32
  }
  func.func @transform_6(%arg0: i32, %arg1: i32) -> (i32, i32) {
    %c0_i32 = arith.constant 0 : i32
    %c0_i32_0 = arith.constant 0 : i32
    return %c0_i32, %arg1 : i32, i32
  }
  func.func @transform_7(%arg0: i32, %arg1: i32) -> (i32, i32) {
    %c0_i32 = arith.constant 0 : i32
    %c0_i32_0 = arith.constant 0 : i32
    return %arg1, %c0_i32 : i32, i32
  }
  func.func @transform_8(%arg0: i32, %arg1: i32) -> (i32, i32) {
    %c0_i32 = arith.constant 0 : i32
    %c0_i32_0 = arith.constant 0 : i32
    %c0_i32_1 = arith.constant 0 : i32
    return %c0_i32, %c0_i32_0 : i32, i32
  }
  func.func @transform_9(%arg0: i32, %arg1: i32) -> (i32, i32) {
    %c0_i32 = arith.constant 0 : i32
    %c0_i32_0 = arith.constant 0 : i32
    return %arg0, %c0_i32 : i32, i32
  }
}

module attributes {stable_mosaic.version = 11 : i64} {
  func.func @_ln_dense_kernel(%arg0: i32, %arg1: i32, %arg2: memref<16x32xf32, #tpu.memory_space<vmem>>, %arg3: memref<1x32xf32, #tpu.memory_space<vmem>>, %arg4: memref<1x32xf32, #tpu.memory_space<vmem>>, %arg5: memref<32x64xbf16, #tpu.memory_space<vmem>>, %arg6: memref<16x64xf32, #tpu.memory_space<vmem>>, %arg7: memref<16x32xbf16, #tpu.memory_space<vmem>>) attributes {dimension_semantics = [#tpu.dimension_semantics<parallel>, #tpu.dimension_semantics<arbitrary>], iteration_bounds = array<i64: 1, 1>, scalar_prefetch = 0 : i64, scratch_operands = 1 : i64, tpu.core_type = #tpu.core_type<tc>, window_params = [{transform_indices = @transform_0, window_bounds = array<i64: 16, 32>}, {pipeline_mode = #tpu.pipeline_mode<synchronous>, transform_indices = @transform_1, window_bounds = array<i64: 1, 32>}, {pipeline_mode = #tpu.pipeline_mode<synchronous>, transform_indices = @transform_2, window_bounds = array<i64: 1, 32>}, {transform_indices = @transform_3, window_bounds = array<i64: 32, 64>}, {transform_indices = @transform_4, window_bounds = array<i64: 16, 64>}]} {
    %c0_i32 = arith.constant 0 : i32
    %0 = arith.cmpi eq, %arg1, %c0_i32 : i32
    %1 = arith.extui %0 : i1 to i32
    %c0_i32_0 = arith.constant 0 : i32
    %2 = arith.cmpi ne, %1, %c0_i32_0 : i32
    scf.if %2 {
      %c0_6 = arith.constant 0 : index
      %c0_7 = arith.constant 0 : index
      %7 = vector.load %arg2[%c0_6, %c0_7] : memref<16x32xf32, #tpu.memory_space<vmem>>, vector<16x32xf32>
      %c0_8 = arith.constant 0 : index
      %c0_9 = arith.constant 0 : index
      %8 = vector.load %arg3[%c0_8, %c0_9] : memref<1x32xf32, #tpu.memory_space<vmem>>, vector<1x32xf32>
      %c0_10 = arith.constant 0 : index
      %c0_11 = arith.constant 0 : index
      %9 = vector.load %arg4[%c0_10, %c0_11] : memref<1x32xf32, #tpu.memory_space<vmem>>, vector<1x32xf32>
      %cst_12 = arith.constant dense<0.000000e+00> : vector<16xf32>
      %10 = vector.multi_reduction <add>, %7, %cst_12 [1] : vector<16x32xf32> to vector<16xf32>
      %11 = vector.shape_cast %10 : vector<16xf32> to vector<16x1xf32>
      %cst_13 = arith.constant 3.200000e+01 : f32
      %12 = vector.broadcast %cst_13 : f32 to vector<16x1xf32>
      %13 = arith.divf %11, %12 : vector<16x1xf32>
      %14 = vector.broadcast %13 : vector<16x1xf32> to vector<16x32xf32>
      %15 = arith.subf %7, %14 : vector<16x32xf32>
      %16 = arith.mulf %15, %15 : vector<16x32xf32>
      %cst_14 = arith.constant dense<0.000000e+00> : vector<16xf32>
      %17 = vector.multi_reduction <add>, %16, %cst_14 [1] : vector<16x32xf32> to vector<16xf32>
      %18 = vector.shape_cast %17 : vector<16xf32> to vector<16x1xf32>
      %cst_15 = arith.constant 3.200000e+01 : f32
      %19 = vector.broadcast %cst_15 : f32 to vector<16x1xf32>
      %20 = arith.divf %18, %19 : vector<16x1xf32>
      %21 = vector.broadcast %13 : vector<16x1xf32> to vector<16x32xf32>
      %22 = arith.subf %7, %21 : vector<16x32xf32>
      %cst_16 = arith.constant 9.99999974E-6 : f32
      %23 = vector.broadcast %cst_16 : f32 to vector<16x1xf32>
      %24 = arith.addf %20, %23 : vector<16x1xf32>
      %25 = math.rsqrt %24 : vector<16x1xf32>
      %26 = vector.broadcast %25 : vector<16x1xf32> to vector<16x32xf32>
      %27 = arith.mulf %22, %26 : vector<16x32xf32>
      %28 = vector.broadcast %8 : vector<1x32xf32> to vector<16x32xf32>
      %29 = arith.mulf %27, %28 : vector<16x32xf32>
      %30 = vector.broadcast %9 : vector<1x32xf32> to vector<16x32xf32>
      %31 = arith.addf %29, %30 : vector<16x32xf32>
      %32 = arith.truncf %31 : vector<16x32xf32> to vector<16x32xbf16>
      %c0_17 = arith.constant 0 : index
      %c0_18 = arith.constant 0 : index
      %33 = vector.load %arg7[%c0_17, %c0_18] : memref<16x32xbf16, #tpu.memory_space<vmem>>, vector<16x32xbf16>
      tpu.vector_store %arg7[%c0_17, %c0_18], %32 {strides = array<i32>} : memref<16x32xbf16, #tpu.memory_space<vmem>>, vector<16x32xbf16>,
    } else {
    }
    %c0 = arith.constant 0 : index
    %c0_1 = arith.constant 0 : index
    %3 = vector.load %arg7[%c0, %c0_1] : memref<16x32xbf16, #tpu.memory_space<vmem>>, vector<16x32xbf16>
    %c0_2 = arith.constant 0 : index
    %c0_3 = arith.constant 0 : index
    %4 = vector.load %arg5[%c0_2, %c0_3] : memref<32x64xbf16, #tpu.memory_space<vmem>>, vector<32x64xbf16>
    %cst = arith.constant dense<0.000000e+00> : vector<16x64xf32>
    %5 = tpu.matmul %3, %4, %cst {dimension_numbers = #tpu.dot_dimension_numbers<[1], [0], [0], [1], [0, 0, 1, 1], [], []>} : vector<16x32xbf16>, vector<32x64xbf16>, vector<16x64xf32> -> vector<16x64xf32>
    %c0_4 = arith.constant 0 : index
    %c0_5 = arith.constant 0 : index
    %6 = vector.load %arg6[%c0_4, %c0_5] : memref<16x64xf32, #tpu.memory_space<vmem>>, vector<16x64xf32>
    tpu.vector_store %arg6[%c0_4, %c0_5], %5 {strides = array<i32>} : memref<16x64xf32, #tpu.memory_space<vmem>>, vector<16x64xf32>,
    return
  }
  func.func @transform_0(%arg0: i32, %arg1: i32) -> (i32, i32) {
    %c0_i32 = arith.constant 0 : i32
    %c0_i32_0 = arith.constant 0 : i32
    return %arg0, %c0_i32 : i32, i32
  }
  func.func @transform_1(%arg0: i32, %arg1: i32) -> (i32, i32) {
    %c0_i32 = arith.constant 0 : i32
    %c0_i32_0 = arith.constant 0 : i32
    %c0_i32_1 = arith.constant 0 : i32
    return %c0_i32, %c0_i32_0 : i32, i32
  }
  func.func @transform_2(%arg0: i32, %arg1: i32) -> (i32, i32) {
    %c0_i32 = arith.constant 0 : i32
    %c0_i32_0 = arith.constant 0 : i32
    %c0_i32_1 = arith.constant 0 : i32
    return %c0_i32, %c0_i32_0 : i32, i32
  }
  func.func @transform_3(%arg0: i32, %arg1: i32) -> (i32, i32) {
    %c0_i32 = arith.constant 0 : i32
    %c0_i32_0 = arith.constant 0 : i32
    return %c0_i32, %arg1 : i32, i32
  }
  func.func @transform_4(%arg0: i32, %arg1: i32) -> (i32, i32) {
    %c0_i32 = arith.constant 0 : i32
    return %arg0, %arg1 : i32, i32
  }
}

</mosaic_0001>

<llo_original>
// kernel: segmented_klm_forward.13
$region0: #{segmented_klm_forward.13}
  #allocation0 [shape = 'u32[]', space=smem, size = 0x4, offset = 0x4, fixed_abs, tag = 'smem constant byte address 0x4 - core index']
  #allocation1 [shape = 'u32[144,128]{1,0:T(1,128)}', space=vmem, size = 0x12000, scoped, tag = 'internal scratch']
  #allocation2 [shape = 'bf16[16,32]{1,0:T(16,128)(2,1)}', space=vmem, size = 0x1000, scoped, tag = 'scratch operand']
  %s0 = inlined_call_operand.hbm [shape: f32[16,32], index: 0, kind: input, shape index: {}]
  %s1 = inlined_call_operand.hbm [shape: f32[1,32], index: 1, kind: input, shape index: {}]
  %s2 = inlined_call_operand.hbm [shape: f32[1,32], index: 2, kind: input, shape index: {}]
  %s3 = inlined_call_operand.hbm [shape: bf16[32,64], index: 3, kind: input, shape index: {}]
  %s4 = inlined_call_operand.hbm [shape: f32[1,64], index: 4, kind: input, shape index: {}]
  %s5 = inlined_call_operand.hbm [shape: bf16[16,64], index: 5, kind: output, shape index: {}]
  %s6 = sld [smem:[#allocation0]]
  $region54: #{segmented_klm_forward.13} parent=0
    _
  %s8 = ssub.s32 1, %s6
  %s9 = scalar_select 0, %s8, %s6
  $region1: #{segmented_klm_forward.13} parent=0
    #allocation3 [shape = 'u8[8192]{0}', space=vmem, size = 0x2000, scoped, tag = 'input window, operand 0, single buffered']
    #allocation4 [shape = 's32[1]{0}', space=sflag, size = 0x4, scoped, tag = 'scoped memory for segmented_klm_forward.13']
    #allocation5 [shape = 's32[1]{0}', space=sflag, size = 0x4, scoped, tag = 'scoped memory for segmented_klm_forward.13']
    #allocation6 [shape = 'u8[512]{0}', space=vmem, size = 0x400, scoped, tag = 'input window, operand 1, single buffered']
    #allocation7 [shape = 's32[1]{0}', space=sflag, size = 0x4, scoped, tag = 'scoped memory for segmented_klm_forward.13']
    #allocation8 [shape = 'u8[512]{0}', space=vmem, size = 0x400, scoped, tag = 'input window, operand 2, single buffered']
    #allocation9 [shape = 'u8[8192]{0}', space=vmem, size = 0x2000, scoped, tag = 'input window, operand 3, single buffered']
    #allocation10 [shape = 's32[1]{0}', space=sflag, size = 0x4, scoped, tag = 'scoped memory for segmented_klm_forward.13']
    #allocation11 [shape = 'u8[512]{0}', space=vmem, size = 0x400, scoped, tag = 'input window, operand 4, single buffered']
    #allocation12 [shape = 'u8[4096]{0}', space=vmem, size = 0x1000, scoped, tag = 'output window, operand 0, single buffered']
    %10 = vsyncpa [#allocation4], 0
    %11 = vsyncpa [#allocation7], 0
    %12 = vsyncpa [#allocation10], 0
    %13 = vsyncpa [#allocation5], 0
    // Predicated region
    $region2: #{segmented_klm_forward.13} parent=1 // pred_check
      _
    $region3: #{segmented_klm_forward.13} parent=1 // pred_check_branch
      %15 = sbr.rel (0) target = $region5
    $region4: #{segmented_klm_forward.13} parent=1 // pred_region
      %s17 = ssub.s32 256, 256
      %18 = vsyncadd [#allocation4], %s17
      %s19 = sshll.u32 [#allocation3], 4
      %s20 = int_to_ptr.vmem [resolvable:$true] %s19
      %25 = dma.hbm_to_vmem [thread:$0]  %s0, 256, %s20, [#allocation4], 128, 128, 8
    $region5: #{segmented_klm_forward.13} parent=1 // pred_fallthru
      _
    // Predicated region
    $region6: #{segmented_klm_forward.13} parent=1 // pred_check
      _
    $region7: #{segmented_klm_forward.13} parent=1 // pred_check_branch
      %27 = sbr.rel (0) target = $region9
    $region8: #{segmented_klm_forward.13} parent=1 // pred_region
      %s29 = ssub.s32 16, 16
      %30 = vsyncadd [#allocation7], %s29
      %s32 = sshll.u32 [#allocation6], 4
      %s33 = int_to_ptr.vmem [resolvable:$true] %s32
      %35 = dma.hbm_to_vmem [thread:$0]  %s1, 16, %s33, [#allocation7]
    $region9: #{segmented_klm_forward.13} parent=1 // pred_fallthru
      _
    // Predicated region
    $region10: #{segmented_klm_forward.13} parent=1 // pred_check
      _
    $region11: #{segmented_klm_forward.13} parent=1 // pred_check_branch
      %37 = sbr.rel (0) target = $region13
    $region12: #{segmented_klm_forward.13} parent=1 // pred_region
      %s39 = ssub.s32 16, 16
      %40 = vsyncadd [#allocation7], %s39
      %s42 = sshll.u32 [#allocation8], 4
      %s43 = int_to_ptr.vmem [resolvable:$true] %s42
      %45 = dma.hbm_to_vmem [thread:$0]  %s2, 16, %s43, [#allocation7]
    $region13: #{segmented_klm_forward.13} parent=1 // pred_fallthru
      _
    // Predicated region
    $region14: #{segmented_klm_forward.13} parent=1 // pred_check
      _
    $region15: #{segmented_klm_forward.13} parent=1 // pred_check_branch
      %47 = sbr.rel (0) target = $region17
    $region16: #{segmented_klm_forward.13} parent=1 // pred_region
      %s49 = ssub.s32 256, 256
      %50 = vsyncadd [#allocation10], %s49
      %s51 = sshll.u32 [#allocation9], 4
      %s52 = int_to_ptr.vmem [resolvable:$true] %s51
      %57 = dma.hbm_to_vmem [thread:$0]  %s3, 256, %s52, [#allocation10], 64, 64, 4
    $region17: #{segmented_klm_forward.13} parent=1 // pred_fallthru
      _
    // Predicated region
    $region18: #{segmented_klm_forward.13} parent=1 // pred_check
      _
    $region19: #{segmented_klm_forward.13} parent=1 // pred_check_branch
      %59 = sbr.rel (0) target = $region21
    $region20: #{segmented_klm_forward.13} parent=1 // pred_region
      %s61 = ssub.s32 16, 16
      %62 = vsyncadd [#allocation10], %s61
      %s64 = sshll.u32 [#allocation11], 4
      %s65 = int_to_ptr.vmem [resolvable:$true] %s64
      %67 = dma.hbm_to_vmem [thread:$0]  %s4, 16, %s65, [#allocation10]
    $region21: #{segmented_klm_forward.13} parent=1 // pred_fallthru
      _
    // Predicated region
    $region22: #{segmented_klm_forward.13} parent=1 // pred_check
      _
    $region23: #{segmented_klm_forward.13} parent=1 // pred_check_branch
      %69 = sbr.rel (0) target = $region25
    $region24: #{segmented_klm_forward.13} parent=1 // pred_region
      %70 = dma.done [#allocation4], 256
    $region25: #{segmented_klm_forward.13} parent=1 // pred_fallthru
      _
    // Predicated region
    $region26: #{segmented_klm_forward.13} parent=1 // pred_check
      _
    $region27: #{segmented_klm_forward.13} parent=1 // pred_check_branch
      %72 = sbr.rel (0) target = $region29
    $region28: #{segmented_klm_forward.13} parent=1 // pred_region
      %73 = dma.done [#allocation7], 16
    $region29: #{segmented_klm_forward.13} parent=1 // pred_fallthru
      _
    // Predicated region
    $region30: #{segmented_klm_forward.13} parent=1 // pred_check
      _
    $region31: #{segmented_klm_forward.13} parent=1 // pred_check_branch
      %75 = sbr.rel (0) target = $region33
    $region32: #{segmented_klm_forward.13} parent=1 // pred_region
      %76 = dma.done [#allocation7], 16
    $region33: #{segmented_klm_forward.13} parent=1 // pred_fallthru
      _
    // Predicated region
    $region34: #{segmented_klm_forward.13} parent=1 // pred_check
      _
    $region35: #{segmented_klm_forward.13} parent=1 // pred_check_branch
      %78 = sbr.rel (0) target = $region37
    $region36: #{segmented_klm_forward.13} parent=1 // pred_region
      %79 = dma.done [#allocation10], 256
    $region37: #{segmented_klm_forward.13} parent=1 // pred_fallthru
      _
    // Predicated region
    $region38: #{segmented_klm_forward.13} parent=1 // pred_check
      _
    $region39: #{segmented_klm_forward.13} parent=1 // pred_check_branch
      %81 = sbr.rel (0) target = $region41
    $region40: #{segmented_klm_forward.13} parent=1 // pred_region
      %82 = dma.done [#allocation10], 16
    $region41: #{segmented_klm_forward.13} parent=1 // pred_fallthru
      _
    %p84 = scmp.eq.s32.totalorder 0, 0
    // Predicated region
    $region42: #{segmented_klm_forward.13} parent=1 // pred_check
      %p85 = pneg %p84
    $region43: #{segmented_klm_forward.13} parent=1 // pred_check_branch
      %87 = sbr.rel (%p85) target = $region45
    $region44: #{segmented_klm_forward.13} parent=1 // pred_region
      %v88 = vld [vmem:[#allocation3] sm:$0xff]
      %v89 = vld [vmem:[#allocation3 + $0x8] sm:$0xff]
      %v90 = vld [vmem:[#allocation6] sm:$0x1]
      %v91 = vld [vmem:[#allocation8] sm:$0x1]
      %vm92 = vcmask 261120
      %v93 = vsel %vm92, %v88, 0.0
      %94 = vadd.xlane.f32.xlu0 %v93
      %v95 = vpop.xlane.xlu0 %94
      %v96 = vsel %vm92, %v89, 0.0
      %97 = vadd.xlane.f32.xlu0 %v96
      %v98 = vpop.xlane.xlu0 %97
      %v99 = vrcp.pop 32.0
      %v100 = vmul.f32 %v95, %v99
      %v101 = vmul.f32 %v98, %v99
      %v102 = vsub.f32 %v88, %v100
      %v103 = vsub.f32 %v89, %v101
      %v104 = vmul.f32 %v102, %v102
      %v105 = vmul.f32 %v103, %v103
      %v106 = vsel %vm92, %v104, 0.0
      %107 = vadd.xlane.f32.xlu0 %v106
      %v108 = vpop.xlane.xlu0 %107
      %v109 = vsel %vm92, %v105, 0.0
      %110 = vadd.xlane.f32.xlu0 %v109
      %v111 = vpop.xlane.xlu0 %110
      %v112 = vmul.f32 %v108, %v99
      %v113 = vmul.f32 %v111, %v99
      %v114 = vadd.f32 %v112, 1e-05
      %v115 = vadd.f32 %v113, 1e-05
      %v116 = vrsqrt.pop %v114
      %v117 = vrsqrt.pop %v115
      %v118 = vmul.f32 %v102, %v116
      %v119 = vmul.f32 %v103, %v117
      %v121 = vlaneseq
      %v122 = vshrl.u32 %v121, 7
      %v123 = vsub.s32 0, %v122
      %v124 = vrot.slane %v90, %v123
      %v126 = vmul.f32 %v118, %v124
      %v127 = vmul.f32 %v119, %v124
      %v129 = vlaneseq
      %v130 = vshrl.u32 %v129, 7
      %v131 = vsub.s32 0, %v130
      %v132 = vrot.slane %v91, %v131
      %v134 = vadd.f32 %v126, %v132
      %v135 = vadd.f32 %v127, %v132
      %v136 = vpack.c.bf16 %v135, %v134
      %137 = vst.msk [vmem:[#allocation2] sm:$0xff] %vm92, %v136
    $region45: #{segmented_klm_forward.13} parent=1 // pred_fallthru
      _
    %v138 = vld [vmem:[#allocation2] sm:$0xff]
    %v139 = vld [vmem:[#allocation9] sm:$0xf]
    %v140 = vld [vmem:[#allocation9 + $0x4] sm:$0xf]
    %v141 = vld [vmem:[#allocation9 + $0x8] sm:$0xf]
    %v142 = vld [vmem:[#allocation9 + $0xc] sm:$0xf]
    %v143 = vld [vmem:[#allocation11] sm:$0x1]
    %v145 = vlaneseq
    %v146 = vshrl.u32 %v145, 7
    %v147 = vsub.s32 0, %v146
    %v148 = vrot.slane %v143, %v147
    %v154 = vunpack.c.l.b16 %v139
    %v155 = vunpack.c.l.b16 %v140
    %v156 = vunpack.c.l.b16 %v141
    %v157 = vunpack.c.l.b16 %v142
    %v158 = vpack.c.b16 %v155, %v154
    %v159 = vpack.c.b16 %v157, %v156
    %vm162 = vcmask 261120
    %v164 = vsel %vm162, %v138, 0
    %166 = vmatprep.subr.bf16.mxu0 0
    %167 = vmatpush1.bf16.msra.mxu0 %v158
    %168 = vmatprep.subr.bf16.mxu0 0
    %169 = vmatpush1.bf16.msra.mxu0 %v159
    %170 = vmatprep.subr.bf16.mxu0 0
    %171 = vmatpush1.bf16.msra.mxu0 0
    %172 = vmatprep.subr.bf16.mxu0 0
    %173 = vmatpush1.bf16.msra.mxu0 0
    %174 = vmatprep.subr.bf16.mxu0 0
    %175 = vmatpush1.bf16.msra.mxu0 0
    %176 = vmatprep.subr.bf16.mxu0 0
    %177 = vmatpush1.bf16.msra.mxu0 0
    %178 = vmatprep.subr.bf16.mxu0 0
    %179 = vmatpush1.bf16.msra.mxu0 0
    %180 = vmatprep.subr.bf16.mxu0 0
    %181 = vmatpush1.bf16.msra.mxu0 0
    %182 = vmatprep.subr.bf16.mxu0 0
    %183 = vmatpush1.bf16.msra.mxu0 0
    %184 = vmatprep.subr.bf16.mxu0 0
    %185 = vmatpush1.bf16.msra.mxu0 0
    %186 = vmatprep.subr.bf16.mxu0 0
    %187 = vmatpush1.bf16.msra.mxu0 0
    %188 = vmatprep.subr.bf16.mxu0 0
    %189 = vmatpush1.bf16.msra.mxu0 0
    %190 = vmatprep.subr.bf16.mxu0 0
    %191 = vmatpush1.bf16.msra.mxu0 0
    %192 = vmatprep.subr.bf16.mxu0 0
    %193 = vmatpush1.bf16.msra.mxu0 0
    %194 = vmatprep.subr.bf16.mxu0 0
    %195 = vmatpush1.bf16.msra.mxu0 0
    %196 = vmatprep.subr.bf16.mxu0 0
    %197 = vmatpush1.bf16.msra.mxu0 0
    %198 = vmatprep.mubr.bf16.mxu0 0
    %199 = vmatmul.mubr.bf16.gmra.mrb[0].mxu0 %v164
    %v200 = vpop.f32.mrb[0].mxu0
    %v201 = vadd.f32 %v148, %v200
    %v202 = vpop.f32.mrb[0].mxu0
    %v203 = vpop.f32.mrb[0].mxu0
    %v204 = vadd.f32 %v148, %v203
    %v205 = vpop.f32.mrb[0].mxu0
    %206 = vdwg.mxu0
    %v207 = vpack.c.bf16 %v204, %v201
    %v209 = vunpack.c.l.b16 %v207
    %v210 = vunpack.c.h.b16 %v207
    %v211 = vpack.c.b16 %v209, %v209
    %v212 = vpack.c.b16 %v210, %v210
    %vm215 = vcmask 519168
    %216 = vst.msk [vmem:[#allocation12] sm:$0xf] %vm215, %v211
    %217 = vst.msk [vmem:[#allocation12 + $0x4] sm:$0xf] %vm215, %v212
    // Predicated region
    $region46: #{segmented_klm_forward.13} parent=1 // pred_check
      _
    $region47: #{segmented_klm_forward.13} parent=1 // pred_check_branch
      %219 = sbr.rel (0) target = $region49
    $region48: #{segmented_klm_forward.13} parent=1 // pred_region
      %s221 = ssub.s32 128, 128
      %222 = vsyncadd [#allocation5], %s221
      %s223 = sshll.u32 [#allocation12], 4
      %s224 = int_to_ptr.vmem [resolvable:$true] %s223
      %229 = dma.vmem_to_hbm [thread:$0]  %s224, 128, %s5, [#allocation5], 64, 64, 4
    $region49: #{segmented_klm_forward.13} parent=1 // pred_fallthru
      _
    // Predicated region
    $region50: #{segmented_klm_forward.13} parent=1 // pred_check
      _
    $region51: #{segmented_klm_forward.13} parent=1 // pred_check_branch
      %231 = sbr.rel (0) target = $region53
    $region52: #{segmented_klm_forward.13} parent=1 // pred_region
      %232 = dma.done [#allocation5], 128
    $region53: #{segmented_klm_forward.13} parent=1 // pred_fallthru
      _
    %233 = vsyncpa [#allocation4], 1
    %234 = vsyncpa [#allocation7], 1
    %235 = vsyncpa [#allocation10], 1
    %236 = vsyncpa [#allocation5], 1

// kernel: segmented_klm_forward.15
$region0: #{segmented_klm_forward.15}
  #allocation0 [shape = 'u32[]', space=smem, size = 0x4, offset = 0x4, fixed_abs, tag = 'smem constant byte address 0x4 - core index']
  #allocation1 [shape = 'u32[144,128]{1,0:T(1,128)}', space=vmem, size = 0x12000, scoped, tag = 'internal scratch']
  %s0 = inlined_call_operand.hbm [shape: bf16[16,32], index: 0, kind: input, shape index: {}]
  %s1 = inlined_call_operand.hbm [shape: bf16[32,32], index: 1, kind: input, shape index: {}]
  %s2 = inlined_call_operand.hbm [shape: f32[1,32], index: 2, kind: input, shape index: {}]
  %s3 = inlined_call_operand.hbm [shape: f32[16,32], index: 3, kind: input, shape index: {}]
  %s4 = inlined_call_operand.hbm [shape: f32[16,32], index: 4, kind: output, shape index: {}]
  %s5 = sld [smem:[#allocation0]]
  $region50: #{segmented_klm_forward.15} parent=0
    _
  %s7 = ssub.s32 1, %s5
  %s8 = scalar_select 0, %s7, %s5
  $region1: #{segmented_klm_forward.15} parent=0
    #allocation2 [shape = 'u8[4096]{0}', space=vmem, size = 0x1000, scoped, tag = 'input window, operand 0, single buffered']
    #allocation3 [shape = 's32[1]{0}', space=sflag, size = 0x4, scoped, tag = 'scoped memory for segmented_klm_forward.15']
    #allocation4 [shape = 's32[1]{0}', space=sflag, size = 0x4, scoped, tag = 'scoped memory for segmented_klm_forward.15']
    #allocation5 [shape = 'u8[8192]{0}', space=vmem, size = 0x2000, scoped, tag = 'input window, operand 1, single buffered']
    #allocation6 [shape = 's32[1]{0}', space=sflag, size = 0x4, scoped, tag = 'scoped memory for segmented_klm_forward.15']
    #allocation7 [shape = 'u8[512]{0}', space=vmem, size = 0x400, scoped, tag = 'input window, operand 2, single buffered']
    #allocation8 [shape = 'u8[8192]{0}', space=vmem, size = 0x2000, scoped, tag = 'input window, operand 3, single buffered']
    #allocation9 [shape = 's32[1]{0}', space=sflag, size = 0x4, scoped, tag = 'scoped memory for segmented_klm_forward.15']
    #allocation10 [shape = 'u8[8192]{0}', space=vmem, size = 0x2000, scoped, tag = 'output window, operand 0, single buffered']
    %9 = vsyncpa [#allocation3], 0
    %10 = vsyncpa [#allocation6], 0
    %11 = vsyncpa [#allocation9], 0
    %12 = vsyncpa [#allocation4], 0
    // Predicated region
    $region2: #{segmented_klm_forward.15} parent=1 // pred_check
      _
    $region3: #{segmented_klm_forward.15} parent=1 // pred_check_branch
      %14 = sbr.rel (0) target = $region5
    $region4: #{segmented_klm_forward.15} parent=1 // pred_region
      %s16 = ssub.s32 128, 128
      %17 = vsyncadd [#allocation3], %s16
      %s18 = sshll.u32 [#allocation2], 4
      %s19 = int_to_ptr.vmem [resolvable:$true] %s18
      %24 = dma.hbm_to_vmem [thread:$0]  %s0, 128, %s19, [#allocation3], 64, 64, 4
    $region5: #{segmented_klm_forward.15} parent=1 // pred_fallthru
      _
    // Predicated region
    $region6: #{segmented_klm_forward.15} parent=1 // pred_check
      _
    $region7: #{segmented_klm_forward.15} parent=1 // pred_check_branch
      %26 = sbr.rel (0) target = $region9
    $region8: #{segmented_klm_forward.15} parent=1 // pred_region
      %s28 = ssub.s32 256, 256
      %29 = vsyncadd [#allocation6], %s28
      %s30 = sshll.u32 [#allocation5], 4
      %s31 = int_to_ptr.vmem [resolvable:$true] %s30
      %36 = dma.hbm_to_vmem [thread:$0]  %s1, 256, %s31, [#allocation6], 64, 64, 4
    $region9: #{segmented_klm_forward.15} parent=1 // pred_fallthru
      _
    // Predicated region
    $region10: #{segmented_klm_forward.15} parent=1 // pred_check
      _
    $region11: #{segmented_klm_forward.15} parent=1 // pred_check_branch
      %38 = sbr.rel (0) target = $region13
    $region12: #{segmented_klm_forward.15} parent=1 // pred_region
      %s40 = ssub.s32 16, 16
      %41 = vsyncadd [#allocation6], %s40
      %s43 = sshll.u32 [#allocation7], 4
      %s44 = int_to_ptr.vmem [resolvable:$true] %s43
      %46 = dma.hbm_to_vmem [thread:$0]  %s2, 16, %s44, [#allocation6]
    $region13: #{segmented_klm_forward.15} parent=1 // pred_fallthru
      _
    // Predicated region
    $region14: #{segmented_klm_forward.15} parent=1 // pred_check
      _
    $region15: #{segmented_klm_forward.15} parent=1 // pred_check_branch
      %48 = sbr.rel (0) target = $region17
    $region16: #{segmented_klm_forward.15} parent=1 // pred_region
      %s50 = ssub.s32 256, 256
      %51 = vsyncadd [#allocation9], %s50
      %s52 = sshll.u32 [#allocation8], 4
      %s53 = int_to_ptr.vmem [resolvable:$true] %s52
      %58 = dma.hbm_to_vmem [thread:$0]  %s3, 256, %s53, [#allocation9], 128, 128, 8
    $region17: #{segmented_klm_forward.15} parent=1 // pred_fallthru
      _
    // Predicated region
    $region18: #{segmented_klm_forward.15} parent=1 // pred_check
      _
    $region19: #{segmented_klm_forward.15} parent=1 // pred_check_branch
      %60 = sbr.rel (0) target = $region21
    $region20: #{segmented_klm_forward.15} parent=1 // pred_region
      %61 = dma.done [#allocation3], 128
    $region21: #{segmented_klm_forward.15} parent=1 // pred_fallthru
      _
    // Predicated region
    $region22: #{segmented_klm_forward.15} parent=1 // pred_check
      _
    $region23: #{segmented_klm_forward.15} parent=1 // pred_check_branch
      %63 = sbr.rel (0) target = $region25
    $region24: #{segmented_klm_forward.15} parent=1 // pred_region
      %64 = dma.done [#allocation6], 256
    $region25: #{segmented_klm_forward.15} parent=1 // pred_fallthru
      _
    // Predicated region
    $region26: #{segmented_klm_forward.15} parent=1 // pred_check
      _
    $region27: #{segmented_klm_forward.15} parent=1 // pred_check_branch
      %66 = sbr.rel (0) target = $region29
    $region28: #{segmented_klm_forward.15} parent=1 // pred_region
      %67 = dma.done [#allocation6], 16
    $region29: #{segmented_klm_forward.15} parent=1 // pred_fallthru
      _
    // Predicated region
    $region30: #{segmented_klm_forward.15} parent=1 // pred_check
      _
    $region31: #{segmented_klm_forward.15} parent=1 // pred_check_branch
      %69 = sbr.rel (0) target = $region33
    $region32: #{segmented_klm_forward.15} parent=1 // pred_region
      %70 = dma.done [#allocation9], 256
    $region33: #{segmented_klm_forward.15} parent=1 // pred_fallthru
      _
    %v72 = vld [vmem:[#allocation2] sm:$0xf]
    %v73 = vld [vmem:[#allocation2 + $0x4] sm:$0xf]
    %v74 = vld [vmem:[#allocation5] sm:$0xf]
    %v75 = vld [vmem:[#allocation5 + $0x4] sm:$0xf]
    %v76 = vld [vmem:[#allocation5 + $0x8] sm:$0xf]
    %v77 = vld [vmem:[#allocation5 + $0xc] sm:$0xf]
    %v80 = vunpack.c.l.b16 %v72
    %v81 = vunpack.c.l.b16 %v73
    %v82 = vpack.c.b16 %v81, %v80
    %v87 = vunpack.c.l.b16 %v74
    %v88 = vunpack.c.l.b16 %v75
    %v89 = vunpack.c.l.b16 %v76
    %v90 = vunpack.c.l.b16 %v77
    %v91 = vpack.c.b16 %v88, %v87
    %v92 = vpack.c.b16 %v90, %v89
    %vm95 = vcmask 261120
    %v97 = vsel %vm95, %v82, 0
    %99 = vmatprep.subr.bf16.mxu0 0
    %100 = vmatpush1.bf16.msra.mxu0 %v91
    %101 = vmatprep.subr.bf16.mxu0 0
    %102 = vmatpush1.bf16.msra.mxu0 %v92
    %103 = vmatprep.subr.bf16.mxu0 0
    %104 = vmatpush1.bf16.msra.mxu0 0
    %105 = vmatprep.subr.bf16.mxu0 0
    %106 = vmatpush1.bf16.msra.mxu0 0
    %107 = vmatprep.subr.bf16.mxu0 0
    %108 = vmatpush1.bf16.msra.mxu0 0
    %109 = vmatprep.subr.bf16.mxu0 0
    %110 = vmatpush1.bf16.msra.mxu0 0
    %111 = vmatprep.subr.bf16.mxu0 0
    %112 = vmatpush1.bf16.msra.mxu0 0
    %113 = vmatprep.subr.bf16.mxu0 0
    %114 = vmatpush1.bf16.msra.mxu0 0
    %115 = vmatprep.subr.bf16.mxu0 0
    %116 = vmatpush1.bf16.msra.mxu0 0
    %117 = vmatprep.subr.bf16.mxu0 0
    %118 = vmatpush1.bf16.msra.mxu0 0
    %119 = vmatprep.subr.bf16.mxu0 0
    %120 = vmatpush1.bf16.msra.mxu0 0
    %121 = vmatprep.subr.bf16.mxu0 0
    %122 = vmatpush1.bf16.msra.mxu0 0
    %123 = vmatprep.subr.bf16.mxu0 0
    %124 = vmatpush1.bf16.msra.mxu0 0
    %125 = vmatprep.subr.bf16.mxu0 0
    %126 = vmatpush1.bf16.msra.mxu0 0
    %127 = vmatprep.subr.bf16.mxu0 0
    %128 = vmatpush1.bf16.msra.mxu0 0
    %129 = vmatprep.subr.bf16.mxu0 0
    %130 = vmatpush1.bf16.msra.mxu0 0
    %131 = vmatprep.mubr.bf16.mxu0 0
    %132 = vmatmul.mubr.bf16.gmra.mrb[0].mxu0 %v97
    %v133 = vpop.f32.mrb[0].mxu0
    %v134 = vadd.f32 0.0, %v133
    %v135 = vpop.f32.mrb[0].mxu0
    %v136 = vpop.f32.mrb[0].mxu0
    %v137 = vadd.f32 0.0, %v136
    %v138 = vpop.f32.mrb[0].mxu0
    %139 = vdwg.mxu0
    %p140 = scmp.eq.s32.totalorder 0, 0
    // Predicated region
    $region34: #{segmented_klm_forward.15} parent=1 // pred_check
      %p141 = pneg %p140
    $region35: #{segmented_klm_forward.15} parent=1 // pred_check_branch
      %143 = sbr.rel (%p141) target = $region37
    $region36: #{segmented_klm_forward.15} parent=1 // pred_region
      %v144 = vld [vmem:[#allocation7] sm:$0x1]
      %v146 = vlaneseq
      %v147 = vshrl.u32 %v146, 7
      %v148 = vsub.s32 0, %v147
      %v149 = vrot.slane %v144, %v148
      %v151 = vadd.f32 %v134, %v149
      %v152 = vadd.f32 %v137, %v149
      %v153 = vld [vmem:[#allocation8] sm:$0xff]
      %v154 = vld [vmem:[#allocation8 + $0x8] sm:$0xff]
      %v155 = vadd.f32 %v151, %v153
      %v156 = vadd.f32 %v152, %v154
      %157 = vst.msk [vmem:[#allocation10] sm:$0xff] %vm95, %v155
      %158 = vst.msk [vmem:[#allocation10 + $0x8] sm:$0xff] %vm95, %v156
    $region37: #{segmented_klm_forward.15} parent=1 // pred_fallthru
      _
    %p159 = scmp.ne.s32.totalorder 0, 0
    // Predicated region
    $region38: #{segmented_klm_forward.15} parent=1 // pred_check
      %p160 = pneg %p159
    $region39: #{segmented_klm_forward.15} parent=1 // pred_check_branch
      %162 = sbr.rel (%p160) target = $region41
    $region40: #{segmented_klm_forward.15} parent=1 // pred_region
      %v163 = vld [vmem:[#allocation10] sm:$0xff]
      %v164 = vld [vmem:[#allocation10 + $0x8] sm:$0xff]
      %v165 = vadd.f32 %v163, %v134
      %v166 = vadd.f32 %v164, %v137
      %167 = vst.msk [vmem:[#allocation10] sm:$0xff] %vm95, %v165
      %168 = vst.msk [vmem:[#allocation10 + $0x8] sm:$0xff] %vm95, %v166
    $region41: #{segmented_klm_forward.15} parent=1 // pred_fallthru
      _
    // Predicated region
    $region42: #{segmented_klm_forward.15} parent=1 // pred_check
      _
    $region43: #{segmented_klm_forward.15} parent=1 // pred_check_branch
      %170 = sbr.rel (0) target = $region45
    $region44: #{segmented_klm_forward.15} parent=1 // pred_region
      %s172 = ssub.s32 256, 256
      %173 = vsyncadd [#allocation4], %s172
      %s174 = sshll.u32 [#allocation10], 4
      %s175 = int_to_ptr.vmem [resolvable:$true] %s174
      %180 = dma.vmem_to_hbm [thread:$0]  %s175, 256, %s4, [#allocation4], 128, 128, 8
    $region45: #{segmented_klm_forward.15} parent=1 // pred_fallthru
      _
    // Predicated region
    $region46: #{segmented_klm_forward.15} parent=1 // pred_check
      _
    $region47: #{segmented_klm_forward.15} parent=1 // pred_check_branch
      %182 = sbr.rel (0) target = $region49
    $region48: #{segmented_klm_forward.15} parent=1 // pred_region
      %183 = dma.done [#allocation4], 256
    $region49: #{segmented_klm_forward.15} parent=1 // pred_fallthru
      _
    %184 = vsyncpa [#allocation3], 1
    %185 = vsyncpa [#allocation6], 1
    %186 = vsyncpa [#allocation9], 1
    %187 = vsyncpa [#allocation4], 1

// kernel: segmented_klm_forward.14
$region0: #{segmented_klm_forward.14}
  #allocation0 [shape = 'u32[]', space=smem, size = 0x4, offset = 0x4, fixed_abs, tag = 'smem constant byte address 0x4 - core index']
  #allocation1 [shape = 'u32[144,128]{1,0:T(1,128)}', space=vmem, size = 0x12000, scoped, tag = 'internal scratch']
  #allocation2 [shape = 'f32[16,1]{1,0:T(8,128)}', space=vmem, size = 0x2000, scoped, tag = 'scratch operand']
  #allocation3 [shape = 'f32[16,1]{1,0:T(8,128)}', space=vmem, size = 0x2000, scoped, tag = 'scratch operand']
  #allocation4 [shape = 'f32[16,8]{1,0:T(8,128)}', space=vmem, size = 0x2000, scoped, tag = 'scratch operand']
  %s0 = inlined_call_operand.hbm [shape: bf16[4,16,8], index: 0, kind: input, shape index: {}]
  %s1 = inlined_call_operand.hbm [shape: bf16[4,16,8], index: 1, kind: input, shape index: {}]
  %s2 = inlined_call_operand.hbm [shape: bf16[4,16,8], index: 2, kind: input, shape index: {}]
  %s3 = inlined_call_operand.hbm [shape: bf16[4,16,8], index: 3, kind: output, shape index: {}]
  %s4 = sld [smem:[#allocation0]]
  $region65: #{segmented_klm_forward.14} parent=0
    _
  %s6 = ssub.s32 1, %s4
  %s7 = scalar_select 0, %s6, %s4
  $region1: #{segmented_klm_forward.14} parent=0
    #allocation5 [shape = 'u8[8192]{0}', space=vmem, size = 0x2000, scoped, tag = 'input window, operand 0']
    #allocation6 [shape = 's32[2]{0}', space=sflag, size = 0x8, scoped, tag = 'scoped memory for segmented_klm_forward.14']
    #allocation7 [shape = 's32[2]{0}', space=sflag, size = 0x8, scoped, tag = 'scoped memory for segmented_klm_forward.14']
    #allocation8 [shape = 'u8[8192]{0}', space=vmem, size = 0x2000, scoped, tag = 'input window, operand 1']
    #allocation9 [shape = 's32[2]{0}', space=sflag, size = 0x8, scoped, tag = 'scoped memory for segmented_klm_forward.14']
    #allocation10 [shape = 'u8[8192]{0}', space=vmem, size = 0x2000, scoped, tag = 'input window, operand 2']
    #allocation11 [shape = 'u8[8192]{0}', space=vmem, size = 0x2000, scoped, tag = 'output window, operand 0']
    %8 = vsyncpa [#allocation6], 0
    %s9 = scalar_lea.sflag [#allocation6], 1
    %10 = vsyncpa %s9, 0
    %11 = vsyncpa [#allocation9], 0
    %s12 = scalar_lea.sflag [#allocation9], 1
    %13 = vsyncpa %s12, 0
    %14 = vsyncpa [#allocation7], 0
    %s15 = scalar_lea.sflag [#allocation7], 1
    %16 = vsyncpa %s15, 0
    loop: start=0, step=1, limit=6
    $region2: #{segmented_klm_forward.14} parent=1 // loop_pre_header
      _
    $region3: #{segmented_klm_forward.14} parent=1 // loop_header
      %s18 = sphi 0, %s22
      %p19 = scmp.ge.s32.totalorder %s18, 6
      %s25 = sphi 0, %s44
      %s26 = sphi 0, %s40
      %s27 = sphi 0, %s36
      %s28 = sphi 0, %s25
      %s29 = sphi 0, %s26
      %s30 = sphi 0, %s27
      %s31 = sphi 0, %s28
      %s32 = sphi 0, %s29
      %s33 = sphi 0, %s30
      %s49 = sphi 0, %s51
      %s52 = sphi 0, %s49
      %s53 = sphi 0, %s52
      %s69 = sphi 0, %s53
      %s77 = sphi 0, %s79
      %s80 = sphi 0, %s77
      %s81 = sphi 0, %s80
      %s97 = sphi 0, %s81
      %s105 = sphi 0, %s107
      %s108 = sphi 0, %s105
      %s109 = sphi 0, %s108
      %s125 = sphi 0, %s109
      %s133 = sphi 0, %s135
      %s136 = sphi 0, %s133
      %s137 = sphi 0, %s136
      %s153 = sphi 0, %s137
    $region4: #{segmented_klm_forward.14} parent=1 // loop_header_branch
      %21 = sbr.rel (%p19) target = $region8
    $region5: #{segmented_klm_forward.14} parent=1 // loop_body
      %s23 = ssub.s32 %s18, 1
      %s24 = ssub.s32 %s18, 2
      %s34 = sadd.s32 1, %s27
      %p35 = scmp.ge.s32.totalorder %s34, 1
      %s36 = scalar_select %p35, 0, %s34
      %s37 = sadd.s32 1, %s26
      %s38 = scalar_select %p35, %s37, %s26
      %p39 = scmp.ge.s32.totalorder %s38, 1
      %s40 = scalar_select %p39, 0, %s38
      %s41 = sadd.s32 1, %s25
      %s42 = scalar_select %p39, %s41, %s25
      %p43 = scmp.ge.s32.totalorder %s42, 4
      %s44 = scalar_select %p43, 0, %s42
      %s45 = ssub.s32 %s25, %s44
      %s46 = ssub.s32 %s26, %s40
      %s47 = sor.u32 %s45, %s46
      %p48 = scmp.eq.s32.totalorder %s47, 0
      %s50 = sadd.s32 %s49, 1
      %s51 = scalar_select %p48, %s49, %s50
      %p54 = pneg %p48
      %p55 = scmp.eq.s32.totalorder %s18, 3
      %p56 = por %p54, %p55
      %p57 = scmp.ne.s32.totalorder %s49, %s52
      %p58 = scmp.eq.s32.totalorder %s18, 0
      %p59 = por %p57, %p58
      %p60 = scmp.ne.s32.totalorder %s49, %s52
      %p61 = scmp.eq.s32.totalorder %s23, 3
      %p62 = por %p60, %p61
      %p63 = scmp.ne.s32.totalorder %s52, %s53
      %p64 = scmp.eq.s32.totalorder %s23, 0
      %p65 = por %p63, %p64
      %p66 = scmp.ne.s32.totalorder %s52, %s53
      %p67 = scmp.eq.s32.totalorder %s24, 3
      %p68 = por %p66, %p67
      %p70 = scmp.ne.s32.totalorder %s53, %s69
      %p71 = scmp.eq.s32.totalorder %s24, 0
      %p72 = por %p70, %p71
      %s73 = ssub.s32 %s25, %s44
      %s74 = ssub.s32 %s27, %s36
      %s75 = sor.u32 %s73, %s74
      %p76 = scmp.eq.s32.totalorder %s75, 0
      %s78 = sadd.s32 %s77, 1
      %s79 = scalar_select %p76, %s77, %s78
      %p82 = pneg %p76
      %p83 = scmp.eq.s32.totalorder %s18, 3
      %p84 = por %p82, %p83
      %p85 = scmp.ne.s32.totalorder %s77, %s80
      %p86 = scmp.eq.s32.totalorder %s18, 0
      %p87 = por %p85, %p86
      %p88 = scmp.ne.s32.totalorder %s77, %s80
      %p89 = scmp.eq.s32.totalorder %s23, 3
      %p90 = por %p88, %p89
      %p91 = scmp.ne.s32.totalorder %s80, %s81
      %p92 = scmp.eq.s32.totalorder %s23, 0
      %p93 = por %p91, %p92
      %p94 = scmp.ne.s32.totalorder %s80, %s81
      %p95 = scmp.eq.s32.totalorder %s24, 3
      %p96 = por %p94, %p95
      %p98 = scmp.ne.s32.totalorder %s81, %s97
      %p99 = scmp.eq.s32.totalorder %s24, 0
      %p100 = por %p98, %p99
      %s101 = ssub.s32 %s25, %s44
      %s102 = ssub.s32 %s27, %s36
      %s103 = sor.u32 %s101, %s102
      %p104 = scmp.eq.s32.totalorder %s103, 0
      %s106 = sadd.s32 %s105, 1
      %s107 = scalar_select %p104, %s105, %s106
      %p110 = pneg %p104
      %p111 = scmp.eq.s32.totalorder %s18, 3
      %p112 = por %p110, %p111
      %p113 = scmp.ne.s32.totalorder %s105, %s108
      %p114 = scmp.eq.s32.totalorder %s18, 0
      %p115 = por %p113, %p114
      %p116 = scmp.ne.s32.totalorder %s105, %s108
      %p117 = scmp.eq.s32.totalorder %s23, 3
      %p118 = por %p116, %p117
      %p119 = scmp.ne.s32.totalorder %s108, %s109
      %p120 = scmp.eq.s32.totalorder %s23, 0
      %p121 = por %p119, %p120
      %p122 = scmp.ne.s32.totalorder %s108, %s109
      %p123 = scmp.eq.s32.totalorder %s24, 3
      %p124 = por %p122, %p123
      %p126 = scmp.ne.s32.totalorder %s109, %s125
      %p127 = scmp.eq.s32.totalorder %s24, 0
      %p128 = por %p126, %p127
      %s129 = ssub.s32 %s25, %s44
      %s130 = ssub.s32 %s26, %s40
      %s131 = sor.u32 %s129, %s130
      %p132 = scmp.eq.s32.totalorder %s131, 0
      %s134 = sadd.s32 %s133, 1
      %s135 = scalar_select %p132, %s133, %s134
      %p138 = pneg %p132
      %p139 = scmp.eq.s32.totalorder %s18, 3
      %p140 = por %p138, %p139
      %p141 = scmp.ne.s32.totalorder %s133, %s136
      %p142 = scmp.eq.s32.totalorder %s18, 0
      %p143 = por %p141, %p142
      %p144 = scmp.ne.s32.totalorder %s133, %s136
      %p145 = scmp.eq.s32.totalorder %s23, 3
      %p146 = por %p144, %p145
      %p147 = scmp.ne.s32.totalorder %s136, %s137
      %p148 = scmp.eq.s32.totalorder %s23, 0
      %p149 = por %p147, %p148
      %p150 = scmp.ne.s32.totalorder %s136, %s137
      %p151 = scmp.eq.s32.totalorder %s24, 3
      %p152 = por %p150, %p151
      %p154 = scmp.ne.s32.totalorder %s137, %s153
      %p155 = scmp.eq.s32.totalorder %s24, 0
      %p156 = por %p154, %p155
      %p157 = scmp.le.s32.totalorder 1, %s18
      %p158 = scmp.lt.s32.totalorder %s18, 5
      %p159 = pnand %p157, %p158
      %p160 = pneg %p159
      // Predicated region
      $region9: #{segmented_klm_forward.14} parent=5 // pred_check
        _
      $region10: #{segmented_klm_forward.14} parent=5 // pred_check_branch
        %162 = sbr.rel (%p159) target = $region12
      $region11: #{segmented_klm_forward.14} parent=5 // pred_region
        %s163 = ssub.s32 %s18, 1
      $region12: #{segmented_klm_forward.14} parent=5 // pred_fallthru
        _
      %p164 = scmp.lt.s32.totalorder %s18, 4
      // Predicated region
      $region13: #{segmented_klm_forward.14} parent=5 // pred_check
        %p165 = pneg %p164
      $region14: #{segmented_klm_forward.14} parent=5 // pred_check_branch
        %167 = sbr.rel (%p165) target = $region16
      $region15: #{segmented_klm_forward.14} parent=5 // pred_region
        // Predicated region
        $region17: #{segmented_klm_forward.14} parent=15 // pred_check
          %p168 = pneg %p59
        $region18: #{segmented_klm_forward.14} parent=15 // pred_check_branch
          %170 = sbr.rel (%p168) target = $region20
        $region19: #{segmented_klm_forward.14} parent=15 // pred_region
          %s171 = sand.u32 %s49, 1
          %s172 = scalar_lea.sflag [#allocation6], %s171
          %s173 = sand.u32 %s49, 1
          %s174 = smul.addr %s173, 8
          %s175 = scalar_lea.vmem [#allocation5], %s174
          %s176 = smul.u32 2, %s26
          %s178 = ssub.s32 128, 128
          %179 = vsyncadd %s172, %s178
          %s180 = smul.addr %s25, 2
          %s181 = sadd.s32 %s176, %s180
          %s182 = smul.addr %s181, 64
          %s183 = scalar_lea.hbm %s0, %s182
          %s184 = sshll.u32 %s175, 4
          %s185 = int_to_ptr.vmem [resolvable:$true] %s184
          %190 = dma.hbm_to_vmem [thread:$0]  %s183, 128, %s185, %s172, 64, 64, 4
        $region20: #{segmented_klm_forward.14} parent=15 // pred_fallthru
          _
        // Predicated region
        $region21: #{segmented_klm_forward.14} parent=15 // pred_check
          %p191 = pneg %p87
        $region22: #{segmented_klm_forward.14} parent=15 // pred_check_branch
          %193 = sbr.rel (%p191) target = $region24
        $region23: #{segmented_klm_forward.14} parent=15 // pred_region
          %s194 = sand.u32 %s18, 1
          %s195 = scalar_lea.sflag [#allocation9], %s194
          %s196 = sand.u32 %s77, 1
          %s197 = smul.addr %s196, 8
          %s198 = scalar_lea.vmem [#allocation8], %s197
          %s199 = smul.u32 2, %s27
          %s201 = ssub.s32 128, 128
          %202 = vsyncadd %s195, %s201
          %s203 = smul.addr %s25, 2
          %s204 = sadd.s32 %s199, %s203
          %s205 = smul.addr %s204, 64
          %s206 = scalar_lea.hbm %s1, %s205
          %s207 = sshll.u32 %s198, 4
          %s208 = int_to_ptr.vmem [resolvable:$true] %s207
          %213 = dma.hbm_to_vmem [thread:$0]  %s206, 128, %s208, %s195, 64, 64, 4
        $region24: #{segmented_klm_forward.14} parent=15 // pred_fallthru
          _
        // Predicated region
        $region25: #{segmented_klm_forward.14} parent=15 // pred_check
          %p214 = pneg %p115
        $region26: #{segmented_klm_forward.14} parent=15 // pred_check_branch
          %216 = sbr.rel (%p214) target = $region28
        $region27: #{segmented_klm_forward.14} parent=15 // pred_region
          %s217 = sand.u32 %s18, 1
          %s218 = scalar_lea.sflag [#allocation9], %s217
          %s219 = sand.u32 %s105, 1
          %s220 = smul.addr %s219, 8
          %s221 = scalar_lea.vmem [#allocation10], %s220
          %s222 = smul.u32 2, %s27
          %s224 = ssub.s32 128, 128
          %225 = vsyncadd %s218, %s224
          %s226 = smul.addr %s25, 2
          %s227 = sadd.s32 %s222, %s226
          %s228 = smul.addr %s227, 64
          %s229 = scalar_lea.hbm %s2, %s228
          %s230 = sshll.u32 %s221, 4
          %s231 = int_to_ptr.vmem [resolvable:$true] %s230
          %236 = dma.hbm_to_vmem [thread:$0]  %s229, 128, %s231, %s218, 64, 64, 4
        $region28: #{segmented_klm_forward.14} parent=15 // pred_fallthru
          _
      $region16: #{segmented_klm_forward.14} parent=5 // pred_fallthru
        _
      %p237 = scmp.le.s32.totalorder 1, %s18
      %p238 = scmp.lt.s32.totalorder %s18, 5
      %p239 = pnand %p237, %p238
      %p240 = pneg %p239
      // Predicated region
      $region29: #{segmented_klm_forward.14} parent=5 // pred_check
        _
      $region30: #{segmented_klm_forward.14} parent=5 // pred_check_branch
        %242 = sbr.rel (%p239) target = $region32
      $region31: #{segmented_klm_forward.14} parent=5 // pred_region
        %s243 = ssub.s32 %s18, 1
        %s244 = sand.u32 %s52, 1
        %s245 = scalar_lea.sflag [#allocation6], %s244
        %s246 = sand.u32 %s52, 1
        %s247 = smul.addr %s246, 8
        %s248 = scalar_lea.vmem [#allocation5], %s247
        // Predicated region
        $region33: #{segmented_klm_forward.14} parent=31 // pred_check
          %p249 = pneg %p65
        $region34: #{segmented_klm_forward.14} parent=31 // pred_check_branch
          %251 = sbr.rel (%p249) target = $region36
        $region35: #{segmented_klm_forward.14} parent=31 // pred_region
          %252 = dma.done %s245, 128
        $region36: #{segmented_klm_forward.14} parent=31 // pred_fallthru
          _
        %s253 = sand.u32 %s23, 1
        %s254 = scalar_lea.sflag [#allocation9], %s253
        %s255 = sand.u32 %s80, 1
        %s256 = smul.addr %s255, 8
        %s257 = scalar_lea.vmem [#allocation8], %s256
        // Predicated region
        $region37: #{segmented_klm_forward.14} parent=31 // pred_check
          %p258 = pneg %p93
        $region38: #{segmented_klm_forward.14} parent=31 // pred_check_branch
          %260 = sbr.rel (%p258) target = $region40
        $region39: #{segmented_klm_forward.14} parent=31 // pred_region
          %261 = dma.done %s254, 128
        $region40: #{segmented_klm_forward.14} parent=31 // pred_fallthru
          _
        %s262 = sand.u32 %s23, 1
        %s263 = scalar_lea.sflag [#allocation9], %s262
        %s264 = sand.u32 %s108, 1
        %s265 = smul.addr %s264, 8
        %s266 = scalar_lea.vmem [#allocation10], %s265
        // Predicated region
        $region41: #{segmented_klm_forward.14} parent=31 // pred_check
          %p267 = pneg %p121
        $region42: #{segmented_klm_forward.14} parent=31 // pred_check_branch
          %269 = sbr.rel (%p267) target = $region44
        $region43: #{segmented_klm_forward.14} parent=31 // pred_region
          %270 = dma.done %s263, 128
        $region44: #{segmented_klm_forward.14} parent=31 // pred_fallthru
          _
        %s271 = sand.u32 %s52, 1
        %s272 = scalar_lea.sflag [#allocation6], %s271
        %s273 = sand.u32 %s52, 1
        %s274 = smul.addr %s273, 8
        %s275 = scalar_lea.vmem [#allocation5], %s274
        %p276 = pneg %p65
        %p277 = pneg %p62
        %s278 = sand.u32 %s23, 1
        %s279 = scalar_lea.sflag [#allocation9], %s278
        %s280 = sand.u32 %s80, 1
        %s281 = smul.addr %s280, 8
        %s282 = scalar_lea.vmem [#allocation8], %s281
        %p283 = pneg %p93
        %p284 = pneg %p90
        %s285 = sand.u32 %s23, 1
        %s286 = scalar_lea.sflag [#allocation9], %s285
        %s287 = sand.u32 %s108, 1
        %s288 = smul.addr %s287, 8
        %s289 = scalar_lea.vmem [#allocation10], %s288
        %p290 = pneg %p121
        %p291 = pneg %p118
        %p292 = pneg %p149
        %p293 = pneg %p146
        %s294 = sand.u32 %s136, 1
        %s295 = scalar_lea.sflag [#allocation7], %s294
        %s296 = sand.u32 %s136, 1
        %s297 = smul.addr %s296, 8
        %s298 = scalar_lea.vmem [#allocation11], %s297
        %s299 = smul.u32 2, %s29
        %s300 = smul.u32 2, %s30
        %s301 = smul.u32 2, %s30
        %s302 = smul.u32 2, %s29
        %p304 = scmp.eq.s32.totalorder %s30, 0
        // Predicated region
        $region45: #{segmented_klm_forward.14} parent=31 // pred_check
          %p305 = pneg %p304
        $region46: #{segmented_klm_forward.14} parent=31 // pred_check_branch
          %307 = sbr.rel (%p305) target = $region48
        $region47: #{segmented_klm_forward.14} parent=31 // pred_region
          %vm308 = vcmask 7168
          %309 = vst.msk [vmem:[#allocation2] sm:$0xff] %vm308, -inf
          %310 = vst.msk [vmem:[#allocation2 + $0x8] sm:$0xff] %vm308, -inf
          %311 = vst.msk [vmem:[#allocation3] sm:$0xff] %vm308, 0.0
          %312 = vst.msk [vmem:[#allocation3 + $0x8] sm:$0xff] %vm308, 0.0
          %vm313 = vcmask 64512
          %314 = vst.msk [vmem:[#allocation4] sm:$0xff] %vm313, 0.0
          %315 = vst.msk [vmem:[#allocation4 + $0x8] sm:$0xff] %vm313, 0.0
        $region48: #{segmented_klm_forward.14} parent=31 // pred_fallthru
          _
        %v316 = vld [vmem:[%s248] sm:$0xf]
        %v317 = vld [vmem:[%s248 + $0x4] sm:$0xf]
        %v318 = vld [vmem:[%s257] sm:$0xf]
        %v319 = vld [vmem:[%s257 + $0x4] sm:$0xf]
        %v320 = vld [vmem:[%s266] sm:$0xf]
        %v321 = vld [vmem:[%s266 + $0x4] sm:$0xf]
        %v324 = vunpack.c.l.b16 %v316
        %v325 = vunpack.c.l.b16 %v317
        %v326 = vpack.c.b16 %v325, %v324
        %v329 = vunpack.c.l.b16 %v318
        %v330 = vunpack.c.l.b16 %v319
        %v331 = vpack.c.b16 %v330, %v329
        %vm332 = vcmask 64512
        %v334 = vsel %vm332, %v326, 0
        %v337 = vsel %vm332, %v331, 0
        %339 = vmatprep.subr.bf16.mxu0 0
        %340 = vmatpush1.bf16.xpose.msra.mxu0 %v337
        %341 = vmatprep.subr.bf16.mxu0 0
        %342 = vmatpush1.bf16.xpose.msra.mxu0 0
        %343 = vmatprep.subr.bf16.mxu0 0
        %344 = vmatpush1.bf16.xpose.msra.mxu0 0
        %345 = vmatprep.subr.bf16.mxu0 0
        %346 = vmatpush1.bf16.xpose.msra.mxu0 0
        %347 = vmatprep.subr.bf16.mxu0 0
        %348 = vmatpush1.bf16.xpose.msra.mxu0 0
        %349 = vmatprep.subr.bf16.mxu0 0
        %350 = vmatpush1.bf16.xpose.msra.mxu0 0
        %351 = vmatprep.subr.bf16.mxu0 0
        %352 = vmatpush1.bf16.xpose.msra.mxu0 0
        %353 = vmatprep.subr.bf16.mxu0 0
        %354 = vmatpush1.bf16.xpose.msra.mxu0 0
        %355 = vmatprep.subr.bf16.mxu0 0
        %356 = vmatpush1.bf16.xpose.msra.mxu0 0
        %357 = vmatprep.subr.bf16.mxu0 0
        %358 = vmatpush1.bf16.xpose.msra.mxu0 0
        %359 = vmatprep.subr.bf16.mxu0 0
        %360 = vmatpush1.bf16.xpose.msra.mxu0 0
        %361 = vmatprep.subr.bf16.mxu0 0
        %362 = vmatpush1.bf16.xpose.msra.mxu0 0
        %363 = vmatprep.subr.bf16.mxu0 0
        %364 = vmatpush1.bf16.xpose.msra.mxu0 0
        %365 = vmatprep.subr.bf16.mxu0 0
        %366 = vmatpush1.bf16.xpose.msra.mxu0 0
        %367 = vmatprep.subr.bf16.mxu0 0
        %368 = vmatpush1.bf16.xpose.msra.mxu0 0
        %369 = vmatprep.subr.bf16.mxu0 0
        %370 = vmatpush1.bf16.xpose.msra.mxu0 0
        %371 = vmatprep.mubr.bf16.mxu0 0
        %372 = vmatmul.mubr.bf16.gmra.mrb[0].mxu0 %v334
        %v373 = vpop.f32.mrb[0].mxu0
        %v374 = vadd.f32 0.0, %v373
        %v375 = vpop.f32.mrb[0].mxu0
        %v376 = vpop.f32.mrb[0].mxu0
        %v377 = vadd.f32 0.0, %v376
        %v378 = vpop.f32.mrb[0].mxu0
        %379 = vdwg.mxu0
        %v380 = vld [vmem:[#allocation2] sm:$0xff]
        %v381 = vld [vmem:[#allocation2 + $0x8] sm:$0xff]
        %vm382 = vcmask 130048
        %v383 = vsel %vm382, %v374, -inf
        %384 = vmax.xlane.f32.xlu0 %v383
        %v385 = vpop.xlane.xlu0 %384
        %v386 = vsel %vm382, %v377, -inf
        %387 = vmax.xlane.f32.xlu0 %v386
        %v388 = vpop.xlane.xlu0 %387
        %v389 = vmax.f32 %v380, %v385
        %v390 = vmax.f32 %v381, %v388
        %v391 = vsub.f32 %v380, %v389
        %v392 = vsub.f32 %v381, %v390
        %v393 = vmul.f32 %v391, 1.442695
        %v394 = vpow.pop %v393
        %v395 = vmul.f32 %v392, 1.442695
        %v396 = vpow.pop %v395
        %398 = vset.pattern.permute.xlu0 0
        %399 = vperm.xlu0 %398, %v389
        %v400 = vpop.permute.xlu0 %399
        %403 = vset.pattern.permute.xlu0 0
        %404 = vperm.xlu0 %403, %v390
        %v405 = vpop.permute.xlu0 %404
        %v407 = vsub.f32 %v374, %v400
        %v408 = vsub.f32 %v377, %v405
        %v409 = vmul.f32 %v407, 1.442695
        %v410 = vpow.pop %v409
        %v411 = vmul.f32 %v408, 1.442695
        %v412 = vpow.pop %v411
        %v413 = vld [vmem:[#allocation3] sm:$0xff]
        %v414 = vld [vmem:[#allocation3 + $0x8] sm:$0xff]
        %v415 = vmul.f32 %v394, %v413
        %v416 = vmul.f32 %v396, %v414
        %v417 = vsel %vm382, %v410, 0.0
        %418 = vadd.xlane.f32.xlu0 %v417
        %v419 = vpop.xlane.xlu0 %418
        %v420 = vsel %vm382, %v412, 0.0
        %421 = vadd.xlane.f32.xlu0 %v420
        %v422 = vpop.xlane.xlu0 %421
        %v423 = vadd.f32 %v415, %v419
        %v424 = vadd.f32 %v416, %v422
        %vm425 = vcmask 7168
        %426 = vst.msk [vmem:[#allocation3] sm:$0xff] %vm425, %v423
        %427 = vst.msk [vmem:[#allocation3 + $0x8] sm:$0xff] %vm425, %v424
        %v428 = vld [vmem:[#allocation4] sm:$0xff]
        %v429 = vld [vmem:[#allocation4 + $0x8] sm:$0xff]
        %431 = vset.pattern.permute.xlu0 0
        %432 = vperm.xlu0 %431, %v394
        %v433 = vpop.permute.xlu0 %432
        %436 = vset.pattern.permute.xlu0 0
        %437 = vperm.xlu0 %436, %v396
        %v438 = vpop.permute.xlu0 %437
        %v440 = vmul.f32 %v433, %v428
        %v441 = vmul.f32 %v438, %v429
        %v442 = vpack.c.bf16 %v412, %v410
        %v445 = vunpack.c.l.b16 %v320
        %v446 = vunpack.c.l.b16 %v321
        %v447 = vpack.c.b16 %v446, %v445
        %v450 = vsel %vm382, %v442, 0
        %452 = vmatprep.subr.bf16.mxu0 0
        %453 = vmatpush1.bf16.msra.mxu0 %v447
        %454 = vmatprep.subr.bf16.mxu0 0
        %455 = vmatpush1.bf16.msra.mxu0 0
        %456 = vmatprep.subr.bf16.mxu0 0
        %457 = vmatpush1.bf16.msra.mxu0 0
        %458 = vmatprep.subr.bf16.mxu0 0
        %459 = vmatpush1.bf16.msra.mxu0 0
        %460 = vmatprep.subr.bf16.mxu0 0
        %461 = vmatpush1.bf16.msra.mxu0 0
        %462 = vmatprep.subr.bf16.mxu0 0
        %463 = vmatpush1.bf16.msra.mxu0 0
        %464 = vmatprep.subr.bf16.mxu0 0
        %465 = vmatpush1.bf16.msra.mxu0 0
        %466 = vmatprep.subr.bf16.mxu0 0
        %467 = vmatpush1.bf16.msra.mxu0 0
        %468 = vmatprep.subr.bf16.mxu0 0
        %469 = vmatpush1.bf16.msra.mxu0 0
        %470 = vmatprep.subr.bf16.mxu0 0
        %471 = vmatpush1.bf16.msra.mxu0 0
        %472 = vmatprep.subr.bf16.mxu0 0
        %473 = vmatpush1.bf16.msra.mxu0 0
        %474 = vmatprep.subr.bf16.mxu0 0
        %475 = vmatpush1.bf16.msra.mxu0 0
        %476 = vmatprep.subr.bf16.mxu0 0
        %477 = vmatpush1.bf16.msra.mxu0 0
        %478 = vmatprep.subr.bf16.mxu0 0
        %479 = vmatpush1.bf16.msra.mxu0 0
        %480 = vmatprep.subr.bf16.mxu0 0
        %481 = vmatpush1.bf16.msra.mxu0 0
        %482 = vmatprep.subr.bf16.mxu0 0
        %483 = vmatpush1.bf16.msra.mxu0 0
        %484 = vmatprep.mubr.bf16.mxu0 0
        %485 = vmatmul.mubr.bf16.gmra.mrb[0].mxu0 %v450
        %v486 = vpop.f32.mrb[0].mxu0
        %v487 = vadd.f32 0.0, %v486
        %v488 = vpop.f32.mrb[0].mxu0
        %v489 = vpop.f32.mrb[0].mxu0
        %v490 = vadd.f32 0.0, %v489
        %v491 = vpop.f32.mrb[0].mxu0
        %492 = vdwg.mxu0
        %v493 = vadd.f32 %v440, %v487
        %v494 = vadd.f32 %v441, %v490
        %495 = vst.msk [vmem:[#allocation4] sm:$0xff] %vm332, %v493
        %496 = vst.msk [vmem:[#allocation4 + $0x8] sm:$0xff] %vm332, %v494
        %497 = vst.msk [vmem:[#allocation2] sm:$0xff] %vm425, %v389
        %498 = vst.msk [vmem:[#allocation2 + $0x8] sm:$0xff] %vm425, %v390
        // Predicated region
        $region49: #{segmented_klm_forward.14} parent=31 // pred_check
          %p499 = pneg %p304
        $region50: #{segmented_klm_forward.14} parent=31 // pred_check_branch
          %501 = sbr.rel (%p499) target = $region52
        $region51: #{segmented_klm_forward.14} parent=31 // pred_region
          %v502 = vld [vmem:[#allocation4] sm:$0xff]
          %v503 = vld [vmem:[#allocation4 + $0x8] sm:$0xff]
          %v504 = vld [vmem:[#allocation3] sm:$0xff]
          %v505 = vld [vmem:[#allocation3 + $0x8] sm:$0xff]
          %v506 = vrcp.pop %v504
          %v507 = vrcp.pop %v505
          %509 = vset.pattern.permute.xlu0 0
          %510 = vperm.xlu0 %509, %v506
          %v511 = vpop.permute.xlu0 %510
          %514 = vset.pattern.permute.xlu0 0
          %515 = vperm.xlu0 %514, %v507
          %v516 = vpop.permute.xlu0 %515
          %v518 = vmul.f32 %v502, %v511
          %v519 = vmul.f32 %v503, %v516
          %v520 = vpack.c.bf16 %v519, %v518
          %v522 = vunpack.c.l.b16 %v520
          %v523 = vunpack.c.h.b16 %v520
          %v524 = vpack.c.b16 %v522, %v522
          %v525 = vpack.c.b16 %v523, %v523
          %vm528 = vcmask 60416
          %529 = vst.msk [vmem:[%s298] sm:$0xf] %vm528, %v524
          %530 = vst.msk [vmem:[%s298 + $0x4] sm:$0xf] %vm528, %v525
        $region52: #{segmented_klm_forward.14} parent=31 // pred_fallthru
          _
        %s531 = sand.u32 %s136, 1
        %s532 = scalar_lea.sflag [#allocation7], %s531
        %s533 = sand.u32 %s136, 1
        %s534 = smul.addr %s533, 8
        %s535 = scalar_lea.vmem [#allocation11], %s534
        // Predicated region
        $region53: #{segmented_klm_forward.14} parent=31 // pred_check
          %p536 = pneg %p146
        $region54: #{segmented_klm_forward.14} parent=31 // pred_check_branch
          %538 = sbr.rel (%p536) target = $region56
        $region55: #{segmented_klm_forward.14} parent=31 // pred_region
          %s539 = smul.u32 2, %s29
          %s541 = ssub.s32 128, 128
          %542 = vsyncadd %s532, %s541
          %s543 = smul.addr %s28, 2
          %s544 = sadd.s32 %s539, %s543
          %s545 = smul.addr %s544, 64
          %s546 = scalar_lea.hbm %s3, %s545
          %s547 = sshll.u32 %s535, 4
          %s548 = int_to_ptr.vmem [resolvable:$true] %s547
          %553 = dma.vmem_to_hbm [thread:$0]  %s548, 128, %s546, %s532, 64, 64, 4
        $region56: #{segmented_klm_forward.14} parent=31 // pred_fallthru
          _
      $region32: #{segmented_klm_forward.14} parent=5 // pred_fallthru
        _
      %p554 = scmp.le.s32.totalorder 2, %s18
      // Predicated region
      $region57: #{segmented_klm_forward.14} parent=5 // pred_check
        %p555 = pneg %p554
      $region58: #{segmented_klm_forward.14} parent=5 // pred_check_branch
        %557 = sbr.rel (%p555) target = $region60
      $region59: #{segmented_klm_forward.14} parent=5 // pred_region
        %s558 = ssub.s32 %s18, 2
        // Predicated region
        $region61: #{segmented_klm_forward.14} parent=59 // pred_check
          %p559 = pneg %p152
        $region62: #{segmented_klm_forward.14} parent=59 // pred_check_branch
          %561 = sbr.rel (%p559) target = $region64
        $region63: #{segmented_klm_forward.14} parent=59 // pred_region
          %s562 = sand.u32 %s137, 1
          %s563 = scalar_lea.sflag [#allocation7], %s562
          %s564 = sand.u32 %s137, 1
          %s565 = smul.addr %s564, 8
          %s566 = scalar_lea.vmem [#allocation11], %s565
          %567 = dma.done %s563, 128
        $region64: #{segmented_klm_forward.14} parent=59 // pred_fallthru
          _
      $region60: #{segmented_klm_forward.14} parent=5 // pred_fallthru
        _
    $region6: #{segmented_klm_forward.14} parent=1 // loop_footer
      %s22 = sadd.s32 1, %s18
    $region7: #{segmented_klm_forward.14} parent=1 // loop_footer_branch
      %17 = sbr.rel target = $region3
    $region8: #{segmented_klm_forward.14} parent=1 // loop_exit
      _
    %568 = vsyncpa [#allocation6], 1
    %s569 = scalar_lea.sflag [#allocation6], 1
    %570 = vsyncpa %s569, 1
    %571 = vsyncpa [#allocation9], 1
    %s572 = scalar_lea.sflag [#allocation9], 1
    %573 = vsyncpa %s572, 1
    %574 = vsyncpa [#allocation7], 1
    %s575 = scalar_lea.sflag [#allocation7], 1
    %576 = vsyncpa %s575, 1

// kernel: segmented_klm_forward.16
$region0: #{segmented_klm_forward.16}
  #allocation0 [shape = 'u32[]', space=smem, size = 0x4, offset = 0x4, fixed_abs, tag = 'smem constant byte address 0x4 - core index']
  #allocation1 [shape = 'u32[144,128]{1,0:T(1,128)}', space=vmem, size = 0x12000, scoped, tag = 'internal scratch']
  #allocation2 [shape = 'bf16[16,32]{1,0:T(16,128)(2,1)}', space=vmem, size = 0x1000, scoped, tag = 'scratch operand']
  %s0 = inlined_call_operand.hbm [shape: f32[16,32], index: 0, kind: input, shape index: {}]
  %s1 = inlined_call_operand.hbm [shape: f32[1,32], index: 1, kind: input, shape index: {}]
  %s2 = inlined_call_operand.hbm [shape: f32[1,32], index: 2, kind: input, shape index: {}]
  %s3 = inlined_call_operand.hbm [shape: bf16[32,64], index: 3, kind: input, shape index: {}]
  %s4 = inlined_call_operand.hbm [shape: f32[1,64], index: 4, kind: input, shape index: {}]
  %s5 = inlined_call_operand.hbm [shape: bf16[32,64], index: 5, kind: input, shape index: {}]
  %s6 = inlined_call_operand.hbm [shape: f32[1,64], index: 6, kind: input, shape index: {}]
  %s7 = inlined_call_operand.hbm [shape: bf16[64,32], index: 7, kind: input, shape index: {}]
  %s8 = inlined_call_operand.hbm [shape: f32[1,32], index: 8, kind: input, shape index: {}]
  %s9 = inlined_call_operand.hbm [shape: f32[16,32], index: 9, kind: output, shape index: {}]
  %s10 = sld [smem:[#allocation0]]
  $region94: #{segmented_klm_forward.16} parent=0
    _
  %s12 = ssub.s32 1, %s10
  %s13 = scalar_select 0, %s12, %s10
  $region1: #{segmented_klm_forward.16} parent=0
    #allocation3 [shape = 'u8[8192]{0}', space=vmem, size = 0x2000, scoped, tag = 'input window, operand 0, single buffered']
    #allocation4 [shape = 's32[1]{0}', space=sflag, size = 0x4, scoped, tag = 'scoped memory for segmented_klm_forward.16']
    #allocation5 [shape = 's32[1]{0}', space=sflag, size = 0x4, scoped, tag = 'scoped memory for segmented_klm_forward.16']
    #allocation6 [shape = 'u8[512]{0}', space=vmem, size = 0x400, scoped, tag = 'input window, operand 1, single buffered']
    #allocation7 [shape = 's32[1]{0}', space=sflag, size = 0x4, scoped, tag = 'scoped memory for segmented_klm_forward.16']
    #allocation8 [shape = 'u8[512]{0}', space=vmem, size = 0x400, scoped, tag = 'input window, operand 2, single buffered']
    #allocation9 [shape = 'u8[8192]{0}', space=vmem, size = 0x2000, scoped, tag = 'input window, operand 3, single buffered']
    #allocation10 [shape = 's32[1]{0}', space=sflag, size = 0x4, scoped, tag = 'scoped memory for segmented_klm_forward.16']
    #allocation11 [shape = 'u8[512]{0}', space=vmem, size = 0x400, scoped, tag = 'input window, operand 4, single buffered']
    #allocation12 [shape = 'u8[8192]{0}', space=vmem, size = 0x2000, scoped, tag = 'input window, operand 5, single buffered']
    #allocation13 [shape = 's32[1]{0}', space=sflag, size = 0x4, scoped, tag = 'scoped memory for segmented_klm_forward.16']
    #allocation14 [shape = 'u8[512]{0}', space=vmem, size = 0x400, scoped, tag = 'input window, operand 6, single buffered']
    #allocation15 [shape = 'u8[16384]{0}', space=vmem, size = 0x4000, scoped, tag = 'input window, operand 7, single buffered']
    #allocation16 [shape = 's32[1]{0}', space=sflag, size = 0x4, scoped, tag = 'scoped memory for segmented_klm_forward.16']
    #allocation17 [shape = 'u8[512]{0}', space=vmem, size = 0x400, scoped, tag = 'input window, operand 8, single buffered']
    #allocation18 [shape = 'u8[8192]{0}', space=vmem, size = 0x2000, scoped, tag = 'output window, operand 0, single buffered']
    %14 = vsyncpa [#allocation4], 0
    %15 = vsyncpa [#allocation7], 0
    %16 = vsyncpa [#allocation10], 0
    %17 = vsyncpa [#allocation13], 0
    %18 = vsyncpa [#allocation16], 0
    %19 = vsyncpa [#allocation5], 0
    // Predicated region
    $region2: #{segmented_klm_forward.16} parent=1 // pred_check
      _
    $region3: #{segmented_klm_forward.16} parent=1 // pred_check_branch
      %21 = sbr.rel (0) target = $region5
    $region4: #{segmented_klm_forward.16} parent=1 // pred_region
      %s23 = ssub.s32 256, 256
      %24 = vsyncadd [#allocation4], %s23
      %s25 = sshll.u32 [#allocation3], 4
      %s26 = int_to_ptr.vmem [resolvable:$true] %s25
      %31 = dma.hbm_to_vmem [thread:$0]  %s0, 256, %s26, [#allocation4], 128, 128, 8
    $region5: #{segmented_klm_forward.16} parent=1 // pred_fallthru
      _
    // Predicated region
    $region6: #{segmented_klm_forward.16} parent=1 // pred_check
      _
    $region7: #{segmented_klm_forward.16} parent=1 // pred_check_branch
      %33 = sbr.rel (0) target = $region9
    $region8: #{segmented_klm_forward.16} parent=1 // pred_region
      %s35 = ssub.s32 16, 16
      %36 = vsyncadd [#allocation7], %s35
      %s38 = sshll.u32 [#allocation6], 4
      %s39 = int_to_ptr.vmem [resolvable:$true] %s38
      %41 = dma.hbm_to_vmem [thread:$0]  %s1, 16, %s39, [#allocation7]
    $region9: #{segmented_klm_forward.16} parent=1 // pred_fallthru
      _
    // Predicated region
    $region10: #{segmented_klm_forward.16} parent=1 // pred_check
      _
    $region11: #{segmented_klm_forward.16} parent=1 // pred_check_branch
      %43 = sbr.rel (0) target = $region13
    $region12: #{segmented_klm_forward.16} parent=1 // pred_region
      %s45 = ssub.s32 16, 16
      %46 = vsyncadd [#allocation7], %s45
      %s48 = sshll.u32 [#allocation8], 4
      %s49 = int_to_ptr.vmem [resolvable:$true] %s48
      %51 = dma.hbm_to_vmem [thread:$0]  %s2, 16, %s49, [#allocation7]
    $region13: #{segmented_klm_forward.16} parent=1 // pred_fallthru
      _
    // Predicated region
    $region14: #{segmented_klm_forward.16} parent=1 // pred_check
      _
    $region15: #{segmented_klm_forward.16} parent=1 // pred_check_branch
      %53 = sbr.rel (0) target = $region17
    $region16: #{segmented_klm_forward.16} parent=1 // pred_region
      %s55 = ssub.s32 256, 256
      %56 = vsyncadd [#allocation10], %s55
      %s57 = sshll.u32 [#allocation9], 4
      %s58 = int_to_ptr.vmem [resolvable:$true] %s57
      %63 = dma.hbm_to_vmem [thread:$0]  %s3, 256, %s58, [#allocation10], 64, 64, 4
    $region17: #{segmented_klm_forward.16} parent=1 // pred_fallthru
      _
    // Predicated region
    $region18: #{segmented_klm_forward.16} parent=1 // pred_check
      _
    $region19: #{segmented_klm_forward.16} parent=1 // pred_check_branch
      %65 = sbr.rel (0) target = $region21
    $region20: #{segmented_klm_forward.16} parent=1 // pred_region
      %s67 = ssub.s32 16, 16
      %68 = vsyncadd [#allocation10], %s67
      %s70 = sshll.u32 [#allocation11], 4
      %s71 = int_to_ptr.vmem [resolvable:$true] %s70
      %73 = dma.hbm_to_vmem [thread:$0]  %s4, 16, %s71, [#allocation10]
    $region21: #{segmented_klm_forward.16} parent=1 // pred_fallthru
      _
    // Predicated region
    $region22: #{segmented_klm_forward.16} parent=1 // pred_check
      _
    $region23: #{segmented_klm_forward.16} parent=1 // pred_check_branch
      %75 = sbr.rel (0) target = $region25
    $region24: #{segmented_klm_forward.16} parent=1 // pred_region
      %s77 = ssub.s32 256, 256
      %78 = vsyncadd [#allocation13], %s77
      %s79 = sshll.u32 [#allocation12], 4
      %s80 = int_to_ptr.vmem [resolvable:$true] %s79
      %85 = dma.hbm_to_vmem [thread:$0]  %s5, 256, %s80, [#allocation13], 64, 64, 4
    $region25: #{segmented_klm_forward.16} parent=1 // pred_fallthru
      _
    // Predicated region
    $region26: #{segmented_klm_forward.16} parent=1 // pred_check
      _
    $region27: #{segmented_klm_forward.16} parent=1 // pred_check_branch
      %87 = sbr.rel (0) target = $region29
    $region28: #{segmented_klm_forward.16} parent=1 // pred_region
      %s89 = ssub.s32 16, 16
      %90 = vsyncadd [#allocation13], %s89
      %s92 = sshll.u32 [#allocation14], 4
      %s93 = int_to_ptr.vmem [resolvable:$true] %s92
      %95 = dma.hbm_to_vmem [thread:$0]  %s6, 16, %s93, [#allocation13]
    $region29: #{segmented_klm_forward.16} parent=1 // pred_fallthru
      _
    // Predicated region
    $region30: #{segmented_klm_forward.16} parent=1 // pred_check
      _
    $region31: #{segmented_klm_forward.16} parent=1 // pred_check_branch
      %97 = sbr.rel (0) target = $region33
    $region32: #{segmented_klm_forward.16} parent=1 // pred_region
      %s99 = ssub.s32 512, 512
      %100 = vsyncadd [#allocation16], %s99
      %s101 = sshll.u32 [#allocation15], 4
      %s102 = int_to_ptr.vmem [resolvable:$true] %s101
      %107 = dma.hbm_to_vmem [thread:$0]  %s7, 512, %s102, [#allocation16], 64, 64, 4
    $region33: #{segmented_klm_forward.16} parent=1 // pred_fallthru
      _
    // Predicated region
    $region34: #{segmented_klm_forward.16} parent=1 // pred_check
      _
    $region35: #{segmented_klm_forward.16} parent=1 // pred_check_branch
      %109 = sbr.rel (0) target = $region37
    $region36: #{segmented_klm_forward.16} parent=1 // pred_region
      %s111 = ssub.s32 16, 16
      %112 = vsyncadd [#allocation16], %s111
      %s114 = sshll.u32 [#allocation17], 4
      %s115 = int_to_ptr.vmem [resolvable:$true] %s114
      %117 = dma.hbm_to_vmem [thread:$0]  %s8, 16, %s115, [#allocation16]
    $region37: #{segmented_klm_forward.16} parent=1 // pred_fallthru
      _
    // Predicated region
    $region38: #{segmented_klm_forward.16} parent=1 // pred_check
      _
    $region39: #{segmented_klm_forward.16} parent=1 // pred_check_branch
      %119 = sbr.rel (0) target = $region41
    $region40: #{segmented_klm_forward.16} parent=1 // pred_region
      %120 = dma.done [#allocation4], 256
    $region41: #{segmented_klm_forward.16} parent=1 // pred_fallthru
      _
    // Predicated region
    $region42: #{segmented_klm_forward.16} parent=1 // pred_check
      _
    $region43: #{segmented_klm_forward.16} parent=1 // pred_check_branch
      %122 = sbr.rel (0) target = $region45
    $region44: #{segmented_klm_forward.16} parent=1 // pred_region
      %123 = dma.done [#allocation7], 16
    $region45: #{segmented_klm_forward.16} parent=1 // pred_fallthru
      _
    // Predicated region
    $region46: #{segmented_klm_forward.16} parent=1 // pred_check
      _
    $region47: #{segmented_klm_forward.16} parent=1 // pred_check_branch
      %125 = sbr.rel (0) target = $region49
    $region48: #{segmented_klm_forward.16} parent=1 // pred_region
      %126 = dma.done [#allocation7], 16
    $region49: #{segmented_klm_forward.16} parent=1 // pred_fallthru
      _
    // Predicated region
    $region50: #{segmented_klm_forward.16} parent=1 // pred_check
      _
    $region51: #{segmented_klm_forward.16} parent=1 // pred_check_branch
      %128 = sbr.rel (0) target = $region53
    $region52: #{segmented_klm_forward.16} parent=1 // pred_region
      %129 = dma.done [#allocation10], 256
    $region53: #{segmented_klm_forward.16} parent=1 // pred_fallthru
      _
    // Predicated region
    $region54: #{segmented_klm_forward.16} parent=1 // pred_check
      _
    $region55: #{segmented_klm_forward.16} parent=1 // pred_check_branch
      %131 = sbr.rel (0) target = $region57
    $region56: #{segmented_klm_forward.16} parent=1 // pred_region
      %132 = dma.done [#allocation10], 16
    $region57: #{segmented_klm_forward.16} parent=1 // pred_fallthru
      _
    // Predicated region
    $region58: #{segmented_klm_forward.16} parent=1 // pred_check
      _
    $region59: #{segmented_klm_forward.16} parent=1 // pred_check_branch
      %134 = sbr.rel (0) target = $region61
    $region60: #{segmented_klm_forward.16} parent=1 // pred_region
      %135 = dma.done [#allocation13], 256
    $region61: #{segmented_klm_forward.16} parent=1 // pred_fallthru
      _
    // Predicated region
    $region62: #{segmented_klm_forward.16} parent=1 // pred_check
      _
    $region63: #{segmented_klm_forward.16} parent=1 // pred_check_branch
      %137 = sbr.rel (0) target = $region65
    $region64: #{segmented_klm_forward.16} parent=1 // pred_region
      %138 = dma.done [#allocation13], 16
    $region65: #{segmented_klm_forward.16} parent=1 // pred_fallthru
      _
    // Predicated region
    $region66: #{segmented_klm_forward.16} parent=1 // pred_check
      _
    $region67: #{segmented_klm_forward.16} parent=1 // pred_check_branch
      %140 = sbr.rel (0) target = $region69
    $region68: #{segmented_klm_forward.16} parent=1 // pred_region
      %141 = dma.done [#allocation16], 512
    $region69: #{segmented_klm_forward.16} parent=1 // pred_fallthru
      _
    // Predicated region
    $region70: #{segmented_klm_forward.16} parent=1 // pred_check
      _
    $region71: #{segmented_klm_forward.16} parent=1 // pred_check_branch
      %143 = sbr.rel (0) target = $region73
    $region72: #{segmented_klm_forward.16} parent=1 // pred_region
      %144 = dma.done [#allocation16], 16
    $region73: #{segmented_klm_forward.16} parent=1 // pred_fallthru
      _
    %p146 = scmp.eq.s32.totalorder 0, 0
    // Predicated region
    $region74: #{segmented_klm_forward.16} parent=1 // pred_check
      %p147 = pneg %p146
    $region75: #{segmented_klm_forward.16} parent=1 // pred_check_branch
      %149 = sbr.rel (%p147) target = $region77
    $region76: #{segmented_klm_forward.16} parent=1 // pred_region
      %v150 = vld [vmem:[#allocation3] sm:$0xff]
      %v151 = vld [vmem:[#allocation3 + $0x8] sm:$0xff]
      %v152 = vld [vmem:[#allocation6] sm:$0x1]
      %v153 = vld [vmem:[#allocation8] sm:$0x1]
      %vm154 = vcmask 261120
      %v155 = vsel %vm154, %v150, 0.0
      %156 = vadd.xlane.f32.xlu0 %v155
      %v157 = vpop.xlane.xlu0 %156
      %v158 = vsel %vm154, %v151, 0.0
      %159 = vadd.xlane.f32.xlu0 %v158
      %v160 = vpop.xlane.xlu0 %159
      %v161 = vrcp.pop 32.0
      %v162 = vmul.f32 %v157, %v161
      %v163 = vmul.f32 %v160, %v161
      %v164 = vsub.f32 %v150, %v162
      %v165 = vsub.f32 %v151, %v163
      %v166 = vmul.f32 %v164, %v164
      %v167 = vmul.f32 %v165, %v165
      %v168 = vsel %vm154, %v166, 0.0
      %169 = vadd.xlane.f32.xlu0 %v168
      %v170 = vpop.xlane.xlu0 %169
      %v171 = vsel %vm154, %v167, 0.0
      %172 = vadd.xlane.f32.xlu0 %v171
      %v173 = vpop.xlane.xlu0 %172
      %v174 = vmul.f32 %v170, %v161
      %v175 = vmul.f32 %v173, %v161
      %v176 = vadd.f32 %v174, 1e-05
      %v177 = vadd.f32 %v175, 1e-05
      %v178 = vrsqrt.pop %v176
      %v179 = vrsqrt.pop %v177
      %v180 = vmul.f32 %v164, %v178
      %v181 = vmul.f32 %v165, %v179
      %v183 = vlaneseq
      %v184 = vshrl.u32 %v183, 7
      %v185 = vsub.s32 0, %v184
      %v186 = vrot.slane %v152, %v185
      %v188 = vmul.f32 %v180, %v186
      %v189 = vmul.f32 %v181, %v186
      %v191 = vlaneseq
      %v192 = vshrl.u32 %v191, 7
      %v193 = vsub.s32 0, %v192
      %v194 = vrot.slane %v153, %v193
      %v196 = vadd.f32 %v188, %v194
      %v197 = vadd.f32 %v189, %v194
      %v198 = vpack.c.bf16 %v197, %v196
      %199 = vst.msk [vmem:[#allocation2] sm:$0xff] %vm154, %v198
    $region77: #{segmented_klm_forward.16} parent=1 // pred_fallthru
      _
    %v200 = vld [vmem:[#allocation2] sm:$0xff]
    %v201 = vld [vmem:[#allocation9] sm:$0xf]
    %v202 = vld [vmem:[#allocation9 + $0x4] sm:$0xf]
    %v203 = vld [vmem:[#allocation9 + $0x8] sm:$0xf]
    %v204 = vld [vmem:[#allocation9 + $0xc] sm:$0xf]
    %v205 = vld [vmem:[#allocation11] sm:$0x1]
    %v207 = vlaneseq
    %v208 = vshrl.u32 %v207, 7
    %v209 = vsub.s32 0, %v208
    %v210 = vrot.slane %v205, %v209
    %v216 = vunpack.c.l.b16 %v201
    %v217 = vunpack.c.l.b16 %v202
    %v218 = vunpack.c.l.b16 %v203
    %v219 = vunpack.c.l.b16 %v204
    %v220 = vpack.c.b16 %v217, %v216
    %v221 = vpack.c.b16 %v219, %v218
    %vm224 = vcmask 261120
    %v226 = vsel %vm224, %v200, 0
    %228 = vmatprep.subr.bf16.mxu0 0
    %229 = vmatpush1.bf16.msra.mxu0 %v220
    %230 = vmatprep.subr.bf16.mxu0 0
    %231 = vmatpush1.bf16.msra.mxu0 %v221
    %232 = vmatprep.subr.bf16.mxu0 0
    %233 = vmatpush1.bf16.msra.mxu0 0
    %234 = vmatprep.subr.bf16.mxu0 0
    %235 = vmatpush1.bf16.msra.mxu0 0
    %236 = vmatprep.subr.bf16.mxu0 0
    %237 = vmatpush1.bf16.msra.mxu0 0
    %238 = vmatprep.subr.bf16.mxu0 0
    %239 = vmatpush1.bf16.msra.mxu0 0
    %240 = vmatprep.subr.bf16.mxu0 0
    %241 = vmatpush1.bf16.msra.mxu0 0
    %242 = vmatprep.subr.bf16.mxu0 0
    %243 = vmatpush1.bf16.msra.mxu0 0
    %244 = vmatprep.subr.bf16.mxu0 0
    %245 = vmatpush1.bf16.msra.mxu0 0
    %246 = vmatprep.subr.bf16.mxu0 0
    %247 = vmatpush1.bf16.msra.mxu0 0
    %248 = vmatprep.subr.bf16.mxu0 0
    %249 = vmatpush1.bf16.msra.mxu0 0
    %250 = vmatprep.subr.bf16.mxu0 0
    %251 = vmatpush1.bf16.msra.mxu0 0
    %252 = vmatprep.subr.bf16.mxu0 0
    %253 = vmatpush1.bf16.msra.mxu0 0
    %254 = vmatprep.subr.bf16.mxu0 0
    %255 = vmatpush1.bf16.msra.mxu0 0
    %256 = vmatprep.subr.bf16.mxu0 0
    %257 = vmatpush1.bf16.msra.mxu0 0
    %258 = vmatprep.subr.bf16.mxu0 0
    %259 = vmatpush1.bf16.msra.mxu0 0
    %260 = vmatprep.mubr.bf16.mxu0 0
    %261 = vmatmul.mubr.bf16.gmra.mrb[0].mxu0 %v226
    %v262 = vpop.f32.mrb[0].mxu0
    %v263 = vadd.f32 %v210, %v262
    %v264 = vpop.f32.mrb[0].mxu0
    %v265 = vpop.f32.mrb[0].mxu0
    %v266 = vadd.f32 %v210, %v265
    %v267 = vpop.f32.mrb[0].mxu0
    %268 = vdwg.mxu0
    %v269 = vld [vmem:[#allocation12] sm:$0xf]
    %v270 = vld [vmem:[#allocation12 + $0x4] sm:$0xf]
    %v271 = vld [vmem:[#allocation12 + $0x8] sm:$0xf]
    %v272 = vld [vmem:[#allocation12 + $0xc] sm:$0xf]
    %v273 = vld [vmem:[#allocation14] sm:$0x1]
    %v275 = vlaneseq
    %v276 = vshrl.u32 %v275, 7
    %v277 = vsub.s32 0, %v276
    %v278 = vrot.slane %v273, %v277
    %v284 = vunpack.c.l.b16 %v269
    %v285 = vunpack.c.l.b16 %v270
    %v286 = vunpack.c.l.b16 %v271
    %v287 = vunpack.c.l.b16 %v272
    %v288 = vpack.c.b16 %v285, %v284
    %v289 = vpack.c.b16 %v287, %v286
    %292 = vmatprep.subr.bf16.mxu0 0
    %293 = vmatpush1.bf16.msra.mxu0 %v288
    %294 = vmatprep.subr.bf16.mxu0 0
    %295 = vmatpush1.bf16.msra.mxu0 %v289
    %296 = vmatprep.subr.bf16.mxu0 0
    %297 = vmatpush1.bf16.msra.mxu0 0
    %298 = vmatprep.subr.bf16.mxu0 0
    %299 = vmatpush1.bf16.msra.mxu0 0
    %300 = vmatprep.subr.bf16.mxu0 0
    %301 = vmatpush1.bf16.msra.mxu0 0
    %302 = vmatprep.subr.bf16.mxu0 0
    %303 = vmatpush1.bf16.msra.mxu0 0
    %304 = vmatprep.subr.bf16.mxu0 0
    %305 = vmatpush1.bf16.msra.mxu0 0
    %306 = vmatprep.subr.bf16.mxu0 0
    %307 = vmatpush1.bf16.msra.mxu0 0
    %308 = vmatprep.subr.bf16.mxu0 0
    %309 = vmatpush1.bf16.msra.mxu0 0
    %310 = vmatprep.subr.bf16.mxu0 0
    %311 = vmatpush1.bf16.msra.mxu0 0
    %312 = vmatprep.subr.bf16.mxu0 0
    %313 = vmatpush1.bf16.msra.mxu0 0
    %314 = vmatprep.subr.bf16.mxu0 0
    %315 = vmatpush1.bf16.msra.mxu0 0
    %316 = vmatprep.subr.bf16.mxu0 0
    %317 = vmatpush1.bf16.msra.mxu0 0
    %318 = vmatprep.subr.bf16.mxu0 0
    %319 = vmatpush1.bf16.msra.mxu0 0
    %320 = vmatprep.subr.bf16.mxu0 0
    %321 = vmatpush1.bf16.msra.mxu0 0
    %322 = vmatprep.subr.bf16.mxu0 0
    %323 = vmatpush1.bf16.msra.mxu0 0
    %324 = vmatprep.mubr.bf16.mxu0 0
    %325 = vmatmul.mubr.bf16.gmra.mrb[0].mxu0 %v226
    %v326 = vpop.f32.mrb[0].mxu0
    %v327 = vadd.f32 %v278, %v326
    %v328 = vpop.f32.mrb[0].mxu0
    %v329 = vpop.f32.mrb[0].mxu0
    %v330 = vadd.f32 %v278, %v329
    %v331 = vpop.f32.mrb[0].mxu0
    %332 = vdwg.mxu0
    %v333 = vxor.u32 %v263, 2147483648
    %v334 = vxor.u32 %v266, 2147483648
    %v335 = vmul.f32 %v333, 1.442695
    %v336 = vpow.pop %v335
    %v337 = vmul.f32 %v334, 1.442695
    %v338 = vpow.pop %v337
    %v339 = vadd.f32 %v336, 1.0
    %v340 = vadd.f32 %v338, 1.0
    %v341 = vrcp.pop %v339
    %v342 = vmul.f32 1.0, %v341
    %v343 = vrcp.pop %v340
    %v344 = vmul.f32 1.0, %v343
    %v345 = vmul.f32 %v263, %v342
    %v346 = vmul.f32 %v266, %v344
    %v347 = vmul.f32 %v345, %v327
    %v348 = vmul.f32 %v346, %v330
    %v349 = vpack.c.bf16 %v348, %v347
    %v350 = vld [vmem:[#allocation15] sm:$0xf]
    %v351 = vld [vmem:[#allocation15 + $0x4] sm:$0xf]
    %v352 = vld [vmem:[#allocation15 + $0x8] sm:$0xf]
    %v353 = vld [vmem:[#allocation15 + $0xc] sm:$0xf]
    %v354 = vld [vmem:[#allocation15 + $0x10] sm:$0xf]
    %v355 = vld [vmem:[#allocation15 + $0x14] sm:$0xf]
    %v356 = vld [vmem:[#allocation15 + $0x18] sm:$0xf]
    %v357 = vld [vmem:[#allocation15 + $0x1c] sm:$0xf]
    %v366 = vunpack.c.l.b16 %v350
    %v367 = vunpack.c.l.b16 %v351
    %v368 = vunpack.c.l.b16 %v352
    %v369 = vunpack.c.l.b16 %v353
    %v370 = vunpack.c.l.b16 %v354
    %v371 = vunpack.c.l.b16 %v355
    %v372 = vunpack.c.l.b16 %v356
    %v373 = vunpack.c.l.b16 %v357
    %v374 = vpack.c.b16 %v367, %v366
    %v375 = vpack.c.b16 %v369, %v368
    %v376 = vpack.c.b16 %v371, %v370
    %v377 = vpack.c.b16 %v373, %v372
    %vm382 = vcmask 523264
    %v384 = vsel %vm382, %v349, 0
    %386 = vmatprep.subr.bf16.mxu0 0
    %387 = vmatpush1.bf16.msra.mxu0 %v374
    %388 = vmatprep.subr.bf16.mxu0 0
    %389 = vmatpush1.bf16.msra.mxu0 %v375
    %390 = vmatprep.subr.bf16.mxu0 0
    %391 = vmatpush1.bf16.msra.mxu0 %v376
    %392 = vmatprep.subr.bf16.mxu0 0
    %393 = vmatpush1.bf16.msra.mxu0 %v377
    %394 = vmatprep.subr.bf16.mxu0 0
    %395 = vmatpush1.bf16.msra.mxu0 0
    %396 = vmatprep.subr.bf16.mxu0 0
    %397 = vmatpush1.bf16.msra.mxu0 0
    %398 = vmatprep.subr.bf16.mxu0 0
    %399 = vmatpush1.bf16.msra.mxu0 0
    %400 = vmatprep.subr.bf16.mxu0 0
    %401 = vmatpush1.bf16.msra.mxu0 0
    %402 = vmatprep.subr.bf16.mxu0 0
    %403 = vmatpush1.bf16.msra.mxu0 0
    %404 = vmatprep.subr.bf16.mxu0 0
    %405 = vmatpush1.bf16.msra.mxu0 0
    %406 = vmatprep.subr.bf16.mxu0 0
    %407 = vmatpush1.bf16.msra.mxu0 0
    %408 = vmatprep.subr.bf16.mxu0 0
    %409 = vmatpush1.bf16.msra.mxu0 0
    %410 = vmatprep.subr.bf16.mxu0 0
    %411 = vmatpush1.bf16.msra.mxu0 0
    %412 = vmatprep.subr.bf16.mxu0 0
    %413 = vmatpush1.bf16.msra.mxu0 0
    %414 = vmatprep.subr.bf16.mxu0 0
    %415 = vmatpush1.bf16.msra.mxu0 0
    %416 = vmatprep.subr.bf16.mxu0 0
    %417 = vmatpush1.bf16.msra.mxu0 0
    %418 = vmatprep.mubr.bf16.mxu0 0
    %419 = vmatmul.mubr.bf16.gmra.mrb[0].mxu0 %v384
    %v420 = vpop.f32.mrb[0].mxu0
    %v421 = vadd.f32 0.0, %v420
    %v422 = vpop.f32.mrb[0].mxu0
    %v423 = vpop.f32.mrb[0].mxu0
    %v424 = vadd.f32 0.0, %v423
    %v425 = vpop.f32.mrb[0].mxu0
    %426 = vdwg.mxu0
    // Predicated region
    $region78: #{segmented_klm_forward.16} parent=1 // pred_check
      %p427 = pneg %p146
    $region79: #{segmented_klm_forward.16} parent=1 // pred_check_branch
      %429 = sbr.rel (%p427) target = $region81
    $region80: #{segmented_klm_forward.16} parent=1 // pred_region
      %v430 = vld [vmem:[#allocation3] sm:$0xff]
      %v431 = vld [vmem:[#allocation3 + $0x8] sm:$0xff]
      %v432 = vld [vmem:[#allocation17] sm:$0x1]
      %v434 = vlaneseq
      %v435 = vshrl.u32 %v434, 7
      %v436 = vsub.s32 0, %v435
      %v437 = vrot.slane %v432, %v436
      %v439 = vadd.f32 %v430, %v437
      %v440 = vadd.f32 %v431, %v437
      %v441 = vadd.f32 %v439, %v421
      %v442 = vadd.f32 %v440, %v424
      %443 = vst.msk [vmem:[#allocation18] sm:$0xff] %vm224, %v441
      %444 = vst.msk [vmem:[#allocation18 + $0x8] sm:$0xff] %vm224, %v442
    $region81: #{segmented_klm_forward.16} parent=1 // pred_fallthru
      _
    %p445 = scmp.ne.s32.totalorder 0, 0
    // Predicated region
    $region82: #{segmented_klm_forward.16} parent=1 // pred_check
      %p446 = pneg %p445
    $region83: #{segmented_klm_forward.16} parent=1 // pred_check_branch
      %448 = sbr.rel (%p446) target = $region85
    $region84: #{segmented_klm_forward.16} parent=1 // pred_region
      %v449 = vld [vmem:[#allocation18] sm:$0xff]
      %v450 = vld [vmem:[#allocation18 + $0x8] sm:$0xff]
      %v451 = vadd.f32 %v449, %v421
      %v452 = vadd.f32 %v450, %v424
      %453 = vst.msk [vmem:[#allocation18] sm:$0xff] %vm224, %v451
      %454 = vst.msk [vmem:[#allocation18 + $0x8] sm:$0xff] %vm224, %v452
    $region85: #{segmented_klm_forward.16} parent=1 // pred_fallthru
      _
    // Predicated region
    $region86: #{segmented_klm_forward.16} parent=1 // pred_check
      _
    $region87: #{segmented_klm_forward.16} parent=1 // pred_check_branch
      %456 = sbr.rel (0) target = $region89
    $region88: #{segmented_klm_forward.16} parent=1 // pred_region
      %s458 = ssub.s32 256, 256
      %459 = vsyncadd [#allocation5], %s458
      %s460 = sshll.u32 [#allocation18], 4
      %s461 = int_to_ptr.vmem [resolvable:$true] %s460
      %466 = dma.vmem_to_hbm [thread:$0]  %s461, 256, %s9, [#allocation5], 128, 128, 8
    $region89: #{segmented_klm_forward.16} parent=1 // pred_fallthru
      _
    // Predicated region
    $region90: #{segmented_klm_forward.16} parent=1 // pred_check
      _
    $region91: #{segmented_klm_forward.16} parent=1 // pred_check_branch
      %468 = sbr.rel (0) target = $region93
    $region92: #{segmented_klm_forward.16} parent=1 // pred_region
      %469 = dma.done [#allocation5], 256
    $region93: #{segmented_klm_forward.16} parent=1 // pred_fallthru
      _
    %470 = vsyncpa [#allocation4], 1
    %471 = vsyncpa [#allocation7], 1
    %472 = vsyncpa [#allocation10], 1
    %473 = vsyncpa [#allocation13], 1
    %474 = vsyncpa [#allocation16], 1
    %475 = vsyncpa [#allocation5], 1

// kernel: segmented_klm_forward.25
$region0: #{segmented_klm_forward.25}
  #allocation0 [shape = 'u32[]', space=smem, size = 0x4, offset = 0x4, fixed_abs, tag = 'smem constant byte address 0x4 - core index']
  #allocation1 [shape = 'u32[144,128]{1,0:T(1,128)}', space=vmem, size = 0x12000, scoped, tag = 'internal scratch']
  #allocation2 [shape = 'bf16[16,32]{1,0:T(16,128)(2,1)}', space=vmem, size = 0x1000, scoped, tag = 'scratch operand']
  %s0 = inlined_call_operand.hbm [shape: f32[16,32], index: 0, kind: input, shape index: {}]
  %s1 = inlined_call_operand.hbm [shape: f32[1,32], index: 1, kind: input, shape index: {}]
  %s2 = inlined_call_operand.hbm [shape: f32[1,32], index: 2, kind: input, shape index: {}]
  %s3 = inlined_call_operand.hbm [shape: bf16[32,64], index: 3, kind: input, shape index: {}]
  %s4 = inlined_call_operand.hbm [shape: f32[16,64], index: 4, kind: output, shape index: {}]
  %s5 = sld [smem:[#allocation0]]
  $region46: #{segmented_klm_forward.25} parent=0
    _
  %s7 = ssub.s32 1, %s5
  %s8 = scalar_select 0, %s7, %s5
  $region1: #{segmented_klm_forward.25} parent=0
    #allocation3 [shape = 'u8[8192]{0}', space=vmem, size = 0x2000, scoped, tag = 'input window, operand 0, single buffered']
    #allocation4 [shape = 's32[1]{0}', space=sflag, size = 0x4, scoped, tag = 'scoped memory for segmented_klm_forward.25']
    #allocation5 [shape = 's32[1]{0}', space=sflag, size = 0x4, scoped, tag = 'scoped memory for segmented_klm_forward.25']
    #allocation6 [shape = 'u8[512]{0}', space=vmem, size = 0x400, scoped, tag = 'input window, operand 1, single buffered']
    #allocation7 [shape = 's32[1]{0}', space=sflag, size = 0x4, scoped, tag = 'scoped memory for segmented_klm_forward.25']
    #allocation8 [shape = 'u8[512]{0}', space=vmem, size = 0x400, scoped, tag = 'input window, operand 2, single buffered']
    #allocation9 [shape = 'u8[8192]{0}', space=vmem, size = 0x2000, scoped, tag = 'input window, operand 3, single buffered']
    #allocation10 [shape = 's32[1]{0}', space=sflag, size = 0x4, scoped, tag = 'scoped memory for segmented_klm_forward.25']
    #allocation11 [shape = 'u8[8192]{0}', space=vmem, size = 0x2000, scoped, tag = 'output window, operand 0, single buffered']
    %9 = vsyncpa [#allocation4], 0
    %10 = vsyncpa [#allocation7], 0
    %11 = vsyncpa [#allocation10], 0
    %12 = vsyncpa [#allocation5], 0
    // Predicated region
    $region2: #{segmented_klm_forward.25} parent=1 // pred_check
      _
    $region3: #{segmented_klm_forward.25} parent=1 // pred_check_branch
      %14 = sbr.rel (0) target = $region5
    $region4: #{segmented_klm_forward.25} parent=1 // pred_region
      %s16 = ssub.s32 256, 256
      %17 = vsyncadd [#allocation4], %s16
      %s18 = sshll.u32 [#allocation3], 4
      %s19 = int_to_ptr.vmem [resolvable:$true] %s18
      %24 = dma.hbm_to_vmem [thread:$0]  %s0, 256, %s19, [#allocation4], 128, 128, 8
    $region5: #{segmented_klm_forward.25} parent=1 // pred_fallthru
      _
    // Predicated region
    $region6: #{segmented_klm_forward.25} parent=1 // pred_check
      _
    $region7: #{segmented_klm_forward.25} parent=1 // pred_check_branch
      %26 = sbr.rel (0) target = $region9
    $region8: #{segmented_klm_forward.25} parent=1 // pred_region
      %s28 = ssub.s32 16, 16
      %29 = vsyncadd [#allocation7], %s28
      %s31 = sshll.u32 [#allocation6], 4
      %s32 = int_to_ptr.vmem [resolvable:$true] %s31
      %34 = dma.hbm_to_vmem [thread:$0]  %s1, 16, %s32, [#allocation7]
    $region9: #{segmented_klm_forward.25} parent=1 // pred_fallthru
      _
    // Predicated region
    $region10: #{segmented_klm_forward.25} parent=1 // pred_check
      _
    $region11: #{segmented_klm_forward.25} parent=1 // pred_check_branch
      %36 = sbr.rel (0) target = $region13
    $region12: #{segmented_klm_forward.25} parent=1 // pred_region
      %s38 = ssub.s32 16, 16
      %39 = vsyncadd [#allocation7], %s38
      %s41 = sshll.u32 [#allocation8], 4
      %s42 = int_to_ptr.vmem [resolvable:$true] %s41
      %44 = dma.hbm_to_vmem [thread:$0]  %s2, 16, %s42, [#allocation7]
    $region13: #{segmented_klm_forward.25} parent=1 // pred_fallthru
      _
    // Predicated region
    $region14: #{segmented_klm_forward.25} parent=1 // pred_check
      _
    $region15: #{segmented_klm_forward.25} parent=1 // pred_check_branch
      %46 = sbr.rel (0) target = $region17
    $region16: #{segmented_klm_forward.25} parent=1 // pred_region
      %s48 = ssub.s32 256, 256
      %49 = vsyncadd [#allocation10], %s48
      %s50 = sshll.u32 [#allocation9], 4
      %s51 = int_to_ptr.vmem [resolvable:$true] %s50
      %56 = dma.hbm_to_vmem [thread:$0]  %s3, 256, %s51, [#allocation10], 64, 64, 4
    $region17: #{segmented_klm_forward.25} parent=1 // pred_fallthru
      _
    // Predicated region
    $region18: #{segmented_klm_forward.25} parent=1 // pred_check
      _
    $region19: #{segmented_klm_forward.25} parent=1 // pred_check_branch
      %58 = sbr.rel (0) target = $region21
    $region20: #{segmented_klm_forward.25} parent=1 // pred_region
      %59 = dma.done [#allocation4], 256
    $region21: #{segmented_klm_forward.25} parent=1 // pred_fallthru
      _
    // Predicated region
    $region22: #{segmented_klm_forward.25} parent=1 // pred_check
      _
    $region23: #{segmented_klm_forward.25} parent=1 // pred_check_branch
      %61 = sbr.rel (0) target = $region25
    $region24: #{segmented_klm_forward.25} parent=1 // pred_region
      %62 = dma.done [#allocation7], 16
    $region25: #{segmented_klm_forward.25} parent=1 // pred_fallthru
      _
    // Predicated region
    $region26: #{segmented_klm_forward.25} parent=1 // pred_check
      _
    $region27: #{segmented_klm_forward.25} parent=1 // pred_check_branch
      %64 = sbr.rel (0) target = $region29
    $region28: #{segmented_klm_forward.25} parent=1 // pred_region
      %65 = dma.done [#allocation7], 16
    $region29: #{segmented_klm_forward.25} parent=1 // pred_fallthru
      _
    // Predicated region
    $region30: #{segmented_klm_forward.25} parent=1 // pred_check
      _
    $region31: #{segmented_klm_forward.25} parent=1 // pred_check_branch
      %67 = sbr.rel (0) target = $region33
    $region32: #{segmented_klm_forward.25} parent=1 // pred_region
      %68 = dma.done [#allocation10], 256
    $region33: #{segmented_klm_forward.25} parent=1 // pred_fallthru
      _
    %p70 = scmp.eq.s32.totalorder 0, 0
    // Predicated region
    $region34: #{segmented_klm_forward.25} parent=1 // pred_check
      %p71 = pneg %p70
    $region35: #{segmented_klm_forward.25} parent=1 // pred_check_branch
      %73 = sbr.rel (%p71) target = $region37
    $region36: #{segmented_klm_forward.25} parent=1 // pred_region
      %v74 = vld [vmem:[#allocation3] sm:$0xff]
      %v75 = vld [vmem:[#allocation3 + $0x8] sm:$0xff]
      %v76 = vld [vmem:[#allocation6] sm:$0x1]
      %v77 = vld [vmem:[#allocation8] sm:$0x1]
      %vm78 = vcmask 261120
      %v79 = vsel %vm78, %v74, 0.0
      %80 = vadd.xlane.f32.xlu0 %v79
      %v81 = vpop.xlane.xlu0 %80
      %v82 = vsel %vm78, %v75, 0.0
      %83 = vadd.xlane.f32.xlu0 %v82
      %v84 = vpop.xlane.xlu0 %83
      %v85 = vrcp.pop 32.0
      %v86 = vmul.f32 %v81, %v85
      %v87 = vmul.f32 %v84, %v85
      %v88 = vsub.f32 %v74, %v86
      %v89 = vsub.f32 %v75, %v87
      %v90 = vmul.f32 %v88, %v88
      %v91 = vmul.f32 %v89, %v89
      %v92 = vsel %vm78, %v90, 0.0
      %93 = vadd.xlane.f32.xlu0 %v92
      %v94 = vpop.xlane.xlu0 %93
      %v95 = vsel %vm78, %v91, 0.0
      %96 = vadd.xlane.f32.xlu0 %v95
      %v97 = vpop.xlane.xlu0 %96
      %v98 = vmul.f32 %v94, %v85
      %v99 = vmul.f32 %v97, %v85
      %v100 = vadd.f32 %v98, 1e-05
      %v101 = vadd.f32 %v99, 1e-05
      %v102 = vrsqrt.pop %v100
      %v103 = vrsqrt.pop %v101
      %v104 = vmul.f32 %v88, %v102
      %v105 = vmul.f32 %v89, %v103
      %v107 = vlaneseq
      %v108 = vshrl.u32 %v107, 7
      %v109 = vsub.s32 0, %v108
      %v110 = vrot.slane %v76, %v109
      %v112 = vmul.f32 %v104, %v110
      %v113 = vmul.f32 %v105, %v110
      %v115 = vlaneseq
      %v116 = vshrl.u32 %v115, 7
      %v117 = vsub.s32 0, %v116
      %v118 = vrot.slane %v77, %v117
      %v120 = vadd.f32 %v112, %v118
      %v121 = vadd.f32 %v113, %v118
      %v122 = vpack.c.bf16 %v121, %v120
      %123 = vst.msk [vmem:[#allocation2] sm:$0xff] %vm78, %v122
    $region37: #{segmented_klm_forward.25} parent=1 // pred_fallthru
      _
    %v124 = vld [vmem:[#allocation2] sm:$0xff]
    %v125 = vld [vmem:[#allocation9] sm:$0xf]
    %v126 = vld [vmem:[#allocation9 + $0x4] sm:$0xf]
    %v127 = vld [vmem:[#allocation9 + $0x8] sm:$0xf]
    %v128 = vld [vmem:[#allocation9 + $0xc] sm:$0xf]
    %v133 = vunpack.c.l.b16 %v125
    %v134 = vunpack.c.l.b16 %v126
    %v135 = vunpack.c.l.b16 %v127
    %v136 = vunpack.c.l.b16 %v128
    %v137 = vpack.c.b16 %v134, %v133
    %v138 = vpack.c.b16 %v136, %v135
    %vm141 = vcmask 261120
    %v143 = vsel %vm141, %v124, 0
    %145 = vmatprep.subr.bf16.mxu0 0
    %146 = vmatpush1.bf16.msra.mxu0 %v137
    %147 = vmatprep.subr.bf16.mxu0 0
    %148 = vmatpush1.bf16.msra.mxu0 %v138
    %149 = vmatprep.subr.bf16.mxu0 0
    %150 = vmatpush1.bf16.msra.mxu0 0
    %151 = vmatprep.subr.bf16.mxu0 0
    %152 = vmatpush1.bf16.msra.mxu0 0
    %153 = vmatprep.subr.bf16.mxu0 0
    %154 = vmatpush1.bf16.msra.mxu0 0
    %155 = vmatprep.subr.bf16.mxu0 0
    %156 = vmatpush1.bf16.msra.mxu0 0
    %157 = vmatprep.subr.bf16.mxu0 0
    %158 = vmatpush1.bf16.msra.mxu0 0
    %159 = vmatprep.subr.bf16.mxu0 0
    %160 = vmatpush1.bf16.msra.mxu0 0
    %161 = vmatprep.subr.bf16.mxu0 0
    %162 = vmatpush1.bf16.msra.mxu0 0
    %163 = vmatprep.subr.bf16.mxu0 0
    %164 = vmatpush1.bf16.msra.mxu0 0
    %165 = vmatprep.subr.bf16.mxu0 0
    %166 = vmatpush1.bf16.msra.mxu0 0
    %167 = vmatprep.subr.bf16.mxu0 0
    %168 = vmatpush1.bf16.msra.mxu0 0
    %169 = vmatprep.subr.bf16.mxu0 0
    %170 = vmatpush1.bf16.msra.mxu0 0
    %171 = vmatprep.subr.bf16.mxu0 0
    %172 = vmatpush1.bf16.msra.mxu0 0
    %173 = vmatprep.subr.bf16.mxu0 0
    %174 = vmatpush1.bf16.msra.mxu0 0
    %175 = vmatprep.subr.bf16.mxu0 0
    %176 = vmatpush1.bf16.msra.mxu0 0
    %177 = vmatprep.mubr.bf16.mxu0 0
    %178 = vmatmul.mubr.bf16.gmra.mrb[0].mxu0 %v143
    %v179 = vpop.f32.mrb[0].mxu0
    %v180 = vadd.f32 0.0, %v179
    %v181 = vpop.f32.mrb[0].mxu0
    %v182 = vpop.f32.mrb[0].mxu0
    %v183 = vadd.f32 0.0, %v182
    %v184 = vpop.f32.mrb[0].mxu0
    %185 = vdwg.mxu0
    %vm186 = vcmask 523264
    %187 = vst.msk [vmem:[#allocation11] sm:$0xff] %vm186, %v180
    %188 = vst.msk [vmem:[#allocation11 + $0x8] sm:$0xff] %vm186, %v183
    // Predicated region
    $region38: #{segmented_klm_forward.25} parent=1 // pred_check
      _
    $region39: #{segmented_klm_forward.25} parent=1 // pred_check_branch
      %190 = sbr.rel (0) target = $region41
    $region40: #{segmented_klm_forward.25} parent=1 // pred_region
      %s192 = ssub.s32 256, 256
      %193 = vsyncadd [#allocation5], %s192
      %s194 = sshll.u32 [#allocation11], 4
      %s195 = int_to_ptr.vmem [resolvable:$true] %s194
      %200 = dma.vmem_to_hbm [thread:$0]  %s195, 256, %s4, [#allocation5], 128, 128, 8
    $region41: #{segmented_klm_forward.25} parent=1 // pred_fallthru
      _
    // Predicated region
    $region42: #{segmented_klm_forward.25} parent=1 // pred_check
      _
    $region43: #{segmented_klm_forward.25} parent=1 // pred_check_branch
      %202 = sbr.rel (0) target = $region45
    $region44: #{segmented_klm_forward.25} parent=1 // pred_region
      %203 = dma.done [#allocation5], 256
    $region45: #{segmented_klm_forward.25} parent=1 // pred_fallthru
      _
    %204 = vsyncpa [#allocation4], 1
    %205 = vsyncpa [#allocation7], 1
    %206 = vsyncpa [#allocation10], 1
    %207 = vsyncpa [#allocation5], 1

</llo_original>
